<compile_context>
chip_gen: v5e
topology: v5e:2x2
jax: 0.10.0
libtpu: 0.0.40
codegen_flags: <defaults>
</compile_context>

<pallas_src>
import jax
import jax.numpy as jnp
from jax.experimental import pallas as pl
from jax.experimental.pallas import tpu as pltpu


C_ENC = 128      # encoder (patch-embed) channels: one full 128-lane vreg
C_OUT_PAD = 8    # 1 seg + 2 reg head channels, zero-padded to 8
PATCH = 32       # encoder output stride (h = H // 32, w = W // 32)


# ---------------------------------------------------------------------------
# Encoder kernel: fused patchify + 32x32 patch-embed matmul.
# One grid step = one 32-row image strip of one batch element.
#   x_ref : (32, w, 32) f32   raw image rows (lane dim = within-patch column)
#   w_ref : (32, 32, C_ENC) bf16   resident weights, tap order (p, q, c)
#   b_ref : (1, C_ENC) f32         resident bias
#   o_ref : (w, C_ENC) bf16
# The rearrange is done implicitly: 32 small MXU dots (K=32), one per patch row,
# accumulate into a (w, 128) f32 value.  No reshapes/transposes in-kernel.
# ---------------------------------------------------------------------------
def encoder_kernel(x_ref, w_ref, b_ref, o_ref):
    acc = jnp.zeros(o_ref.shape, jnp.float32)
    for p in range(PATCH):
        acc = acc + jnp.dot(
            x_ref[p].astype(jnp.bfloat16), w_ref[p],
            preferred_element_type=jnp.float32)
    o_ref[...] = (acc + b_ref[...]).astype(o_ref.dtype)


def patch_embed(strips, enc_w, enc_b):
    """strips: (B*h, 32, w, 32) f32 -> feats (B*h, w, C_ENC) bf16."""
    n_strips, _, w, _ = strips.shape
    return pl.pallas_call(
        encoder_kernel,
        out_shape=jax.ShapeDtypeStruct((n_strips, w, C_ENC), jnp.bfloat16),
        grid_spec=pltpu.PrefetchScalarGridSpec(
            num_scalar_prefetch=0,
            grid=(n_strips,),
            in_specs=[
                pl.BlockSpec((None, PATCH, w, PATCH), lambda n: (n, 0, 0, 0)),
                pl.BlockSpec((PATCH, PATCH, C_ENC), lambda n: (0, 0, 0)),
                pl.BlockSpec((1, C_ENC), lambda n: (0, 0)),
            ],
            out_specs=pl.BlockSpec((None, w, C_ENC), lambda n: (n, 0, 0)),
        ),
        compiler_params=pltpu.CompilerParams(
            dimension_semantics=("parallel",),
            vmem_limit_bytes=32 << 20,
        ),
        cost_estimate=pl.CostEstimate(
            flops=2 * n_strips * w * (PATCH * PATCH) * C_ENC,
            transcendentals=0,
            bytes_accessed=(strips.size * 4 + enc_w.size * 2
                            + enc_b.size * 4 + n_strips * w * C_ENC * 2),
        ),
    )(strips, enc_w, enc_b)


# ---------------------------------------------------------------------------
# Head kernel: fused seg (1ch) + reg (2ch) 3x3 conv, padding=1, on the feats.
# One grid step = one output patch-row of one batch element.  The three padded
# feature rows (i, i+1, i+2) arrive as three BlockSpec views of the same array;
# the 3x3 gather is 9 static shifted slices + MXU dots in VMEM (no im2col slab).
#   top/mid/bot_ref : (w+2, C_ENC) bf16
#   w_ref           : (9, C_ENC, C_OUT_PAD) bf16, tap index = dy*3 + dx
#   b_ref           : (1, C_OUT_PAD) f32
#   o_ref           : (w, C_OUT_PAD) f32
# ---------------------------------------------------------------------------
def head_kernel(top_ref, mid_ref, bot_ref, w_ref, b_ref, o_ref):
    w_out = o_ref.shape[0]
    rows = (top_ref, mid_ref, bot_ref)
    acc = jnp.zeros(o_ref.shape, jnp.float32)
    for dy in range(3):
        r = rows[dy][...]                                  # (w+2, C_ENC) bf16
        for dx in range(3):
            acc = acc + jnp.dot(
                r[dx:dx + w_out, :], w_ref[dy * 3 + dx],
                preferred_element_type=jnp.float32)
    o_ref[...] = acc + b_ref[...]


def _row_spec(wp2, dy):
    def imap(b, i):
        return (b, i + dy, 0, 0)
    return pl.BlockSpec((None, None, wp2, C_ENC), imap)


def conv_heads(feats_pad, head_w, head_b):
    """feats_pad: (B, h+2, w+2, C_ENC) bf16 -> (B, h, w, C_OUT_PAD) f32."""
    B, hp2, wp2, _ = feats_pad.shape
    h, w = hp2 - 2, wp2 - 2
    return pl.pallas_call(
        head_kernel,
        out_shape=jax.ShapeDtypeStruct((B, h, w, C_OUT_PAD), jnp.float32),
        grid_spec=pltpu.PrefetchScalarGridSpec(
            num_scalar_prefetch=0,
            grid=(B, h),
            in_specs=[
                _row_spec(wp2, 0),
                _row_spec(wp2, 1),
                _row_spec(wp2, 2),
                pl.BlockSpec((9, C_ENC, C_OUT_PAD), lambda b, i: (0, 0, 0)),
                pl.BlockSpec((1, C_OUT_PAD), lambda b, i: (0, 0)),
            ],
            out_specs=pl.BlockSpec((None, None, w, C_OUT_PAD),
                                   lambda b, i: (b, i, 0, 0)),
        ),
        compiler_params=pltpu.CompilerParams(
            dimension_semantics=("parallel", "parallel"),
            vmem_limit_bytes=32 << 20,
        ),
        cost_estimate=pl.CostEstimate(
            flops=2 * B * h * w * 9 * C_ENC * C_OUT_PAD,
            transcendentals=0,
            bytes_accessed=(3 * feats_pad.size * 2 + head_w.size * 2
                            + head_b.size * 4 + B * h * w * C_OUT_PAD * 4),
        ),
    )(feats_pad, feats_pad, feats_pad, head_w, head_b)


# ---------------------------------------------------------------------------
# Full forward: img (B, 1, H, W) -> y_pred (B, 1, h, w), t_pred (B, 2, h, w)
# ---------------------------------------------------------------------------
def model_forward(img, params):
    B, cin, H, W = img.shape
    assert cin == 1 and H % PATCH == 0 and W % PATCH == 0
    h, w = H // PATCH, W // PATCH

    # metadata-only reshape: (B,1,H,W) -> (B*h, 32, w, 32); rearrange + cast fused in-kernel
    strips = img.reshape(B * h, PATCH, w, PATCH)
    feats = patch_embed(strips, params["enc_w"].astype(jnp.bfloat16), params["enc_b"])
    feats = feats.reshape(B, h, w, C_ENC)

    # zero padding=1 for the 3x3 heads (tiny copy relative to image traffic)
    feats_pad = jnp.pad(feats, ((0, 0), (1, 1), (1, 1), (0, 0)))
    out = conv_heads(feats_pad,
                     params["head_w"].astype(jnp.bfloat16), params["head_b"])

    y_pred = jnp.transpose(out[..., 0:1], (0, 3, 1, 2))   # (B, 1, h, w)
    t_pred = jnp.transpose(out[..., 1:3], (0, 3, 1, 2))   # (B, 2, h, w)
    return y_pred, t_pred


def init_params(key):
    k1, k2, k3 = jax.random.split(key, 3)
    enc_w = jax.random.normal(k1, (PATCH, PATCH, C_ENC), jnp.float32) * 0.02
    enc_b = jnp.zeros((1, C_ENC), jnp.float32)
    head_w_real = jax.random.normal(k2, (3, 3, C_ENC, 3), jnp.float32) * 0.05
    head_w = jnp.zeros((3, 3, C_ENC, C_OUT_PAD), jnp.float32)
    head_w = head_w.at[..., :3].set(head_w_real).reshape(9, C_ENC, C_OUT_PAD)
    head_b = jnp.zeros((1, C_OUT_PAD), jnp.float32)
    head_b = head_b.at[0, :3].set(jax.random.normal(k3, (3,), jnp.float32) * 0.01)
    return {"enc_w": enc_w, "enc_b": enc_b, "head_w": head_w, "head_b": head_b}


def reference_forward(img, params):
    """Pure-JAX f32 reference with the same weight conventions (for validation)."""
    B, _, H, W = img.shape
    h, w = H // PATCH, W // PATCH
    patches = img.reshape(B, h, PATCH, w, PATCH).transpose(0, 1, 3, 2, 4)
    patches = patches.reshape(B, h, w, PATCH * PATCH)
    feats = jnp.einsum("bhwk,kc->bhwc", patches,
                       params["enc_w"].reshape(PATCH * PATCH, C_ENC)) + params["enc_b"][0]
    fp = jnp.pad(feats, ((0, 0), (1, 1), (1, 1), (0, 0)))
    out = jnp.zeros((B, h, w, C_OUT_PAD), jnp.float32) + params["head_b"][0]
    for dy in range(3):
        for dx in range(3):
            out = out + jnp.einsum("bhwc,co->bhwo",
                                   fp[:, dy:dy + h, dx:dx + w, :],
                                   params["head_w"][dy * 3 + dx])
    y = jnp.transpose(out[..., 0:1], (0, 3, 1, 2))
    t = jnp.transpose(out[..., 1:3], (0, 3, 1, 2))
    return y, t


if __name__ == "__main__":
    key = jax.random.PRNGKey(0)
    kp, kx = jax.random.split(key)
    params = init_params(kp)

    B, H, W = 2, 64, 64                      # h = w = 2
    img = jax.random.normal(kx, (B, 1, H, W), jnp.float32)

    y_pred, t_pred = jax.jit(model_forward)(img, params)
    jax.block_until_ready((y_pred, t_pred))

    assert y_pred.shape == (B, 1, H // 32, W // 32)
    assert t_pred.shape == (B, 2, H // 32, W // 32)

    # loose tolerance: kernel path uses bf16 MXU operands with f32 accumulation
    y_ref, t_ref = reference_forward(img, params)
    err = max(float(jnp.max(jnp.abs(y_pred - y_ref))),
              float(jnp.max(jnp.abs(t_pred - t_ref))))
    assert err < 1.5e-1, f"numerics mismatch vs reference: max abs err {err}"

    print("KERNEL_OK")
</pallas_src>

<mosaic_0001>
module attributes {stable_mosaic.version = 11 : i64} {
  func.func @encoder_kernel(%arg0: i32, %arg1: memref<1x32x2x32xf32, #tpu.memory_space<vmem>>, %arg2: memref<32x32x128xbf16, #tpu.memory_space<vmem>>, %arg3: memref<1x128xf32, #tpu.memory_space<vmem>>, %arg4: memref<1x2x128xbf16, #tpu.memory_space<vmem>>) attributes {dimension_semantics = [#tpu.dimension_semantics<parallel>], iteration_bounds = array<i64: 4>, scalar_prefetch = 0 : i64, scratch_operands = 0 : i64, tpu.core_type = #tpu.core_type<tc>, window_params = [{transform_indices = @transform_0, window_bounds = array<i64: 1, 32, 2, 32>}, {pipeline_mode = #tpu.pipeline_mode<synchronous>, transform_indices = @transform_1, window_bounds = array<i64: 32, 32, 128>}, {pipeline_mode = #tpu.pipeline_mode<synchronous>, transform_indices = @transform_2, window_bounds = array<i64: 1, 128>}, {transform_indices = @transform_3, window_bounds = array<i64: 1, 2, 128>}]} {
    %cst = arith.constant 0.000000e+00 : f32
    %0 = vector.broadcast %cst : f32 to vector<2x128xf32>
    %c0 = arith.constant 0 : index
    %c0_0 = arith.constant 0 : index
    %c0_1 = arith.constant 0 : index
    %c0_2 = arith.constant 0 : index
    %1 = vector.load %arg1[%c0, %c0_0, %c0_1, %c0_2] : memref<1x32x2x32xf32, #tpu.memory_space<vmem>>, vector<1x1x2x32xf32>
    %2 = vector.shape_cast %1 : vector<1x1x2x32xf32> to vector<2x32xf32>
    %3 = arith.truncf %2 : vector<2x32xf32> to vector<2x32xbf16>
    %c0_3 = arith.constant 0 : index
    %c0_4 = arith.constant 0 : index
    %c0_5 = arith.constant 0 : index
    %4 = vector.load %arg2[%c0_3, %c0_4, %c0_5] : memref<32x32x128xbf16, #tpu.memory_space<vmem>>, vector<1x32x128xbf16>
    %5 = vector.shape_cast %4 : vector<1x32x128xbf16> to vector<32x128xbf16>
    %cst_6 = arith.constant dense<0.000000e+00> : vector<2x128xf32>
    %6 = tpu.matmul %3, %5, %cst_6 {dimension_numbers = #tpu.dot_dimension_numbers<[1], [0], [0], [1], [0, 0, 1, 1], [], []>} : vector<2x32xbf16>, vector<32x128xbf16>, vector<2x128xf32> -> vector<2x128xf32>
    %7 = arith.addf %0, %6 : vector<2x128xf32>
    %c0_7 = arith.constant 0 : index
    %c1 = arith.constant 1 : index
    %c0_8 = arith.constant 0 : index
    %c0_9 = arith.constant 0 : index
    %8 = vector.load %arg1[%c0_7, %c1, %c0_8, %c0_9] : memref<1x32x2x32xf32, #tpu.memory_space<vmem>>, vector<1x1x2x32xf32>
    %9 = vector.shape_cast %8 : vector<1x1x2x32xf32> to vector<2x32xf32>
    %10 = arith.truncf %9 : vector<2x32xf32> to vector<2x32xbf16>
    %c1_10 = arith.constant 1 : index
    %c0_11 = arith.constant 0 : index
    %c0_12 = arith.constant 0 : index
    %11 = vector.load %arg2[%c1_10, %c0_11, %c0_12] : memref<32x32x128xbf16, #tpu.memory_space<vmem>>, vector<1x32x128xbf16>
    %12 = vector.shape_cast %11 : vector<1x32x128xbf16> to vector<32x128xbf16>
    %cst_13 = arith.constant dense<0.000000e+00> : vector<2x128xf32>
    %13 = tpu.matmul %10, %12, %cst_13 {dimension_numbers = #tpu.dot_dimension_numbers<[1], [0], [0], [1], [0, 0, 1, 1], [], []>} : vector<2x32xbf16>, vector<32x128xbf16>, vector<2x128xf32> -> vector<2x128xf32>
    %14 = arith.addf %7, %13 : vector<2x128xf32>
    %c0_14 = arith.constant 0 : index
    %c2 = arith.constant 2 : index
    %c0_15 = arith.constant 0 : index
    %c0_16 = arith.constant 0 : index
    %15 = vector.load %arg1[%c0_14, %c2, %c0_15, %c0_16] : memref<1x32x2x32xf32, #tpu.memory_space<vmem>>, vector<1x1x2x32xf32>
    %16 = vector.shape_cast %15 : vector<1x1x2x32xf32> to vector<2x32xf32>
    %17 = arith.truncf %16 : vector<2x32xf32> to vector<2x32xbf16>
    %c2_17 = arith.constant 2 : index
    %c0_18 = arith.constant 0 : index
    %c0_19 = arith.constant 0 : index
    %18 = vector.load %arg2[%c2_17, %c0_18, %c0_19] : memref<32x32x128xbf16, #tpu.memory_space<vmem>>, vector<1x32x128xbf16>
    %19 = vector.shape_cast %18 : vector<1x32x128xbf16> to vector<32x128xbf16>
    %cst_20 = arith.constant dense<0.000000e+00> : vector<2x128xf32>
    %20 = tpu.matmul %17, %19, %cst_20 {dimension_numbers = #tpu.dot_dimension_numbers<[1], [0], [0], [1], [0, 0, 1, 1], [], []>} : vector<2x32xbf16>, vector<32x128xbf16>, vector<2x128xf32> -> vector<2x128xf32>
    %21 = arith.addf %14, %20 : vector<2x128xf32>
    %c0_21 = arith.constant 0 : index
    %c3 = arith.constant 3 : index
    %c0_22 = arith.constant 0 : index
    %c0_23 = arith.constant 0 : index
    %22 = vector.load %arg1[%c0_21, %c3, %c0_22, %c0_23] : memref<1x32x2x32xf32, #tpu.memory_space<vmem>>, vector<1x1x2x32xf32>
    %23 = vector.shape_cast %22 : vector<1x1x2x32xf32> to vector<2x32xf32>
    %24 = arith.truncf %23 : vector<2x32xf32> to vector<2x32xbf16>
    %c3_24 = arith.constant 3 : index
    %c0_25 = arith.constant 0 : index
    %c0_26 = arith.constant 0 : index
    %25 = vector.load %arg2[%c3_24, %c0_25, %c0_26] : memref<32x32x128xbf16, #tpu.memory_space<vmem>>, vector<1x32x128xbf16>
    %26 = vector.shape_cast %25 : vector<1x32x128xbf16> to vector<32x128xbf16>
    %cst_27 = arith.constant dense<0.000000e+00> : vector<2x128xf32>
    %27 = tpu.matmul %24, %26, %cst_27 {dimension_numbers = #tpu.dot_dimension_numbers<[1], [0], [0], [1], [0, 0, 1, 1], [], []>} : vector<2x32xbf16>, vector<32x128xbf16>, vector<2x128xf32> -> vector<2x128xf32>
    %28 = arith.addf %21, %27 : vector<2x128xf32>
    %c0_28 = arith.constant 0 : index
    %c4 = arith.constant 4 : index
    %c0_29 = arith.constant 0 : index
    %c0_30 = arith.constant 0 : index
    %29 = vector.load %arg1[%c0_28, %c4, %c0_29, %c0_30] : memref<1x32x2x32xf32, #tpu.memory_space<vmem>>, vector<1x1x2x32xf32>
    %30 = vector.shape_cast %29 : vector<1x1x2x32xf32> to vector<2x32xf32>
    %31 = arith.truncf %30 : vector<2x32xf32> to vector<2x32xbf16>
    %c4_31 = arith.constant 4 : index
    %c0_32 = arith.constant 0 : index
    %c0_33 = arith.constant 0 : index
    %32 = vector.load %arg2[%c4_31, %c0_32, %c0_33] : memref<32x32x128xbf16, #tpu.memory_space<vmem>>, vector<1x32x128xbf16>
    %33 = vector.shape_cast %32 : vector<1x32x128xbf16> to vector<32x128xbf16>
    %cst_34 = arith.constant dense<0.000000e+00> : vector<2x128xf32>
    %34 = tpu.matmul %31, %33, %cst_34 {dimension_numbers = #tpu.dot_dimension_numbers<[1], [0], [0], [1], [0, 0, 1, 1], [], []>} : vector<2x32xbf16>, vector<32x128xbf16>, vector<2x128xf32> -> vector<2x128xf32>
    %35 = arith.addf %28, %34 : vector<2x128xf32>
    %c0_35 = arith.constant 0 : index
    %c5 = arith.constant 5 : index
    %c0_36 = arith.constant 0 : index
    %c0_37 = arith.constant 0 : index
    %36 = vector.load %arg1[%c0_35, %c5, %c0_36, %c0_37] : memref<1x32x2x32xf32, #tpu.memory_space<vmem>>, vector<1x1x2x32xf32>
    %37 = vector.shape_cast %36 : vector<1x1x2x32xf32> to vector<2x32xf32>
    %38 = arith.truncf %37 : vector<2x32xf32> to vector<2x32xbf16>
    %c5_38 = arith.constant 5 : index
    %c0_39 = arith.constant 0 : index
    %c0_40 = arith.constant 0 : index
    %39 = vector.load %arg2[%c5_38, %c0_39, %c0_40] : memref<32x32x128xbf16, #tpu.memory_space<vmem>>, vector<1x32x128xbf16>
    %40 = vector.shape_cast %39 : vector<1x32x128xbf16> to vector<32x128xbf16>
    %cst_41 = arith.constant dense<0.000000e+00> : vector<2x128xf32>
    %41 = tpu.matmul %38, %40, %cst_41 {dimension_numbers = #tpu.dot_dimension_numbers<[1], [0], [0], [1], [0, 0, 1, 1], [], []>} : vector<2x32xbf16>, vector<32x128xbf16>, vector<2x128xf32> -> vector<2x128xf32>
    %42 = arith.addf %35, %41 : vector<2x128xf32>
    %c0_42 = arith.constant 0 : index
    %c6 = arith.constant 6 : index
    %c0_43 = arith.constant 0 : index
    %c0_44 = arith.constant 0 : index
    %43 = vector.load %arg1[%c0_42, %c6, %c0_43, %c0_44] : memref<1x32x2x32xf32, #tpu.memory_space<vmem>>, vector<1x1x2x32xf32>
    %44 = vector.shape_cast %43 : vector<1x1x2x32xf32> to vector<2x32xf32>
    %45 = arith.truncf %44 : vector<2x32xf32> to vector<2x32xbf16>
    %c6_45 = arith.constant 6 : index
    %c0_46 = arith.constant 0 : index
    %c0_47 = arith.constant 0 : index
    %46 = vector.load %arg2[%c6_45, %c0_46, %c0_47] : memref<32x32x128xbf16, #tpu.memory_space<vmem>>, vector<1x32x128xbf16>
    %47 = vector.shape_cast %46 : vector<1x32x128xbf16> to vector<32x128xbf16>
    %cst_48 = arith.constant dense<0.000000e+00> : vector<2x128xf32>
    %48 = tpu.matmul %45, %47, %cst_48 {dimension_numbers = #tpu.dot_dimension_numbers<[1], [0], [0], [1], [0, 0, 1, 1], [], []>} : vector<2x32xbf16>, vector<32x128xbf16>, vector<2x128xf32> -> vector<2x128xf32>
    %49 = arith.addf %42, %48 : vector<2x128xf32>
    %c0_49 = arith.constant 0 : index
    %c7 = arith.constant 7 : index
    %c0_50 = arith.constant 0 : index
    %c0_51 = arith.constant 0 : index
    %50 = vector.load %arg1[%c0_49, %c7, %c0_50, %c0_51] : memref<1x32x2x32xf32, #tpu.memory_space<vmem>>, vector<1x1x2x32xf32>
    %51 = vector.shape_cast %50 : vector<1x1x2x32xf32> to vector<2x32xf32>
    %52 = arith.truncf %51 : vector<2x32xf32> to vector<2x32xbf16>
    %c7_52 = arith.constant 7 : index
    %c0_53 = arith.constant 0 : index
    %c0_54 = arith.constant 0 : index
    %53 = vector.load %arg2[%c7_52, %c0_53, %c0_54] : memref<32x32x128xbf16, #tpu.memory_space<vmem>>, vector<1x32x128xbf16>
    %54 = vector.shape_cast %53 : vector<1x32x128xbf16> to vector<32x128xbf16>
    %cst_55 = arith.constant dense<0.000000e+00> : vector<2x128xf32>
    %55 = tpu.matmul %52, %54, %cst_55 {dimension_numbers = #tpu.dot_dimension_numbers<[1], [0], [0], [1], [0, 0, 1, 1], [], []>} : vector<2x32xbf16>, vector<32x128xbf16>, vector<2x128xf32> -> vector<2x128xf32>
    %56 = arith.addf %49, %55 : vector<2x128xf32>
    %c0_56 = arith.constant 0 : index
    %c8 = arith.constant 8 : index
    %c0_57 = arith.constant 0 : index
    %c0_58 = arith.constant 0 : index
    %57 = vector.load %arg1[%c0_56, %c8, %c0_57, %c0_58] : memref<1x32x2x32xf32, #tpu.memory_space<vmem>>, vector<1x1x2x32xf32>
    %58 = vector.shape_cast %57 : vector<1x1x2x32xf32> to vector<2x32xf32>
    %59 = arith.truncf %58 : vector<2x32xf32> to vector<2x32xbf16>
    %c8_59 = arith.constant 8 : index
    %c0_60 = arith.constant 0 : index
    %c0_61 = arith.constant 0 : index
    %60 = vector.load %arg2[%c8_59, %c0_60, %c0_61] : memref<32x32x128xbf16, #tpu.memory_space<vmem>>, vector<1x32x128xbf16>
    %61 = vector.shape_cast %60 : vector<1x32x128xbf16> to vector<32x128xbf16>
    %cst_62 = arith.constant dense<0.000000e+00> : vector<2x128xf32>
    %62 = tpu.matmul %59, %61, %cst_62 {dimension_numbers = #tpu.dot_dimension_numbers<[1], [0], [0], [1], [0, 0, 1, 1], [], []>} : vector<2x32xbf16>, vector<32x128xbf16>, vector<2x128xf32> -> vector<2x128xf32>
    %63 = arith.addf %56, %62 : vector<2x128xf32>
    %c0_63 = arith.constant 0 : index
    %c9 = arith.constant 9 : index
    %c0_64 = arith.constant 0 : index
    %c0_65 = arith.constant 0 : index
    %64 = vector.load %arg1[%c0_63, %c9, %c0_64, %c0_65] : memref<1x32x2x32xf32, #tpu.memory_space<vmem>>, vector<1x1x2x32xf32>
    %65 = vector.shape_cast %64 : vector<1x1x2x32xf32> to vector<2x32xf32>
    %66 = arith.truncf %65 : vector<2x32xf32> to vector<2x32xbf16>
    %c9_66 = arith.constant 9 : index
    %c0_67 = arith.constant 0 : index
    %c0_68 = arith.constant 0 : index
    %67 = vector.load %arg2[%c9_66, %c0_67, %c0_68] : memref<32x32x128xbf16, #tpu.memory_space<vmem>>, vector<1x32x128xbf16>
    %68 = vector.shape_cast %67 : vector<1x32x128xbf16> to vector<32x128xbf16>
    %cst_69 = arith.constant dense<0.000000e+00> : vector<2x128xf32>
    %69 = tpu.matmul %66, %68, %cst_69 {dimension_numbers = #tpu.dot_dimension_numbers<[1], [0], [0], [1], [0, 0, 1, 1], [], []>} : vector<2x32xbf16>, vector<32x128xbf16>, vector<2x128xf32> -> vector<2x128xf32>
    %70 = arith.addf %63, %69 : vector<2x128xf32>
    %c0_70 = arith.constant 0 : index
    %c10 = arith.constant 10 : index
    %c0_71 = arith.constant 0 : index
    %c0_72 = arith.constant 0 : index
    %71 = vector.load %arg1[%c0_70, %c10, %c0_71, %c0_72] : memref<1x32x2x32xf32, #tpu.memory_space<vmem>>, vector<1x1x2x32xf32>
    %72 = vector.shape_cast %71 : vector<1x1x2x32xf32> to vector<2x32xf32>
    %73 = arith.truncf %72 : vector<2x32xf32> to vector<2x32xbf16>
    %c10_73 = arith.constant 10 : index
    %c0_74 = arith.constant 0 : index
    %c0_75 = arith.constant 0 : index
    %74 = vector.load %arg2[%c10_73, %c0_74, %c0_75] : memref<32x32x128xbf16, #tpu.memory_space<vmem>>, vector<1x32x128xbf16>
    %75 = vector.shape_cast %74 : vector<1x32x128xbf16> to vector<32x128xbf16>
    %cst_76 = arith.constant dense<0.000000e+00> : vector<2x128xf32>
    %76 = tpu.matmul %73, %75, %cst_76 {dimension_numbers = #tpu.dot_dimension_numbers<[1], [0], [0], [1], [0, 0, 1, 1], [], []>} : vector<2x32xbf16>, vector<32x128xbf16>, vector<2x128xf32> -> vector<2x128xf32>
    %77 = arith.addf %70, %76 : vector<2x128xf32>
    %c0_77 = arith.constant 0 : index
    %c11 = arith.constant 11 : index
    %c0_78 = arith.constant 0 : index
    %c0_79 = arith.constant 0 : index
    %78 = vector.load %arg1[%c0_77, %c11, %c0_78, %c0_79] : memref<1x32x2x32xf32, #tpu.memory_space<vmem>>, vector<1x1x2x32xf32>
    %79 = vector.shape_cast %78 : vector<1x1x2x32xf32> to vector<2x32xf32>
    %80 = arith.truncf %79 : vector<2x32xf32> to vector<2x32xbf16>
    %c11_80 = arith.constant 11 : index
    %c0_81 = arith.constant 0 : index
    %c0_82 = arith.constant 0 : index
    %81 = vector.load %arg2[%c11_80, %c0_81, %c0_82] : memref<32x32x128xbf16, #tpu.memory_space<vmem>>, vector<1x32x128xbf16>
    %82 = vector.shape_cast %81 : vector<1x32x128xbf16> to vector<32x128xbf16>
    %cst_83 = arith.constant dense<0.000000e+00> : vector<2x128xf32>
    %83 = tpu.matmul %80, %82, %cst_83 {dimension_numbers = #tpu.dot_dimension_numbers<[1], [0], [0], [1], [0, 0, 1, 1], [], []>} : vector<2x32xbf16>, vector<32x128xbf16>, vector<2x128xf32> -> vector<2x128xf32>
    %84 = arith.addf %77, %83 : vector<2x128xf32>
    %c0_84 = arith.constant 0 : index
    %c12 = arith.constant 12 : index
    %c0_85 = arith.constant 0 : index
    %c0_86 = arith.constant 0 : index
    %85 = vector.load %arg1[%c0_84, %c12, %c0_85, %c0_86] : memref<1x32x2x32xf32, #tpu.memory_space<vmem>>, vector<1x1x2x32xf32>
    %86 = vector.shape_cast %85 : vector<1x1x2x32xf32> to vector<2x32xf32>
    %87 = arith.truncf %86 : vector<2x32xf32> to vector<2x32xbf16>
    %c12_87 = arith.constant 12 : index
    %c0_88 = arith.constant 0 : index
    %c0_89 = arith.constant 0 : index
    %88 = vector.load %arg2[%c12_87, %c0_88, %c0_89] : memref<32x32x128xbf16, #tpu.memory_space<vmem>>, vector<1x32x128xbf16>
    %89 = vector.shape_cast %88 : vector<1x32x128xbf16> to vector<32x128xbf16>
    %cst_90 = arith.constant dense<0.000000e+00> : vector<2x128xf32>
    %90 = tpu.matmul %87, %89, %cst_90 {dimension_numbers = #tpu.dot_dimension_numbers<[1], [0], [0], [1], [0, 0, 1, 1], [], []>} : vector<2x32xbf16>, vector<32x128xbf16>, vector<2x128xf32> -> vector<2x128xf32>
    %91 = arith.addf %84, %90 : vector<2x128xf32>
    %c0_91 = arith.constant 0 : index
    %c13 = arith.constant 13 : index
    %c0_92 = arith.constant 0 : index
    %c0_93 = arith.constant 0 : index
    %92 = vector.load %arg1[%c0_91, %c13, %c0_92, %c0_93] : memref<1x32x2x32xf32, #tpu.memory_space<vmem>>, vector<1x1x2x32xf32>
    %93 = vector.shape_cast %92 : vector<1x1x2x32xf32> to vector<2x32xf32>
    %94 = arith.truncf %93 : vector<2x32xf32> to vector<2x32xbf16>
    %c13_94 = arith.constant 13 : index
    %c0_95 = arith.constant 0 : index
    %c0_96 = arith.constant 0 : index
    %95 = vector.load %arg2[%c13_94, %c0_95, %c0_96] : memref<32x32x128xbf16, #tpu.memory_space<vmem>>, vector<1x32x128xbf16>
    %96 = vector.shape_cast %95 : vector<1x32x128xbf16> to vector<32x128xbf16>
    %cst_97 = arith.constant dense<0.000000e+00> : vector<2x128xf32>
    %97 = tpu.matmul %94, %96, %cst_97 {dimension_numbers = #tpu.dot_dimension_numbers<[1], [0], [0], [1], [0, 0, 1, 1], [], []>} : vector<2x32xbf16>, vector<32x128xbf16>, vector<2x128xf32> -> vector<2x128xf32>
    %98 = arith.addf %91, %97 : vector<2x128xf32>
    %c0_98 = arith.constant 0 : index
    %c14 = arith.constant 14 : index
    %c0_99 = arith.constant 0 : index
    %c0_100 = arith.constant 0 : index
    %99 = vector.load %arg1[%c0_98, %c14, %c0_99, %c0_100] : memref<1x32x2x32xf32, #tpu.memory_space<vmem>>, vector<1x1x2x32xf32>
    %100 = vector.shape_cast %99 : vector<1x1x2x32xf32> to vector<2x32xf32>
    %101 = arith.truncf %100 : vector<2x32xf32> to vector<2x32xbf16>
    %c14_101 = arith.constant 14 : index
    %c0_102 = arith.constant 0 : index
    %c0_103 = arith.constant 0 : index
    %102 = vector.load %arg2[%c14_101, %c0_102, %c0_103] : memref<32x32x128xbf16, #tpu.memory_space<vmem>>, vector<1x32x128xbf16>
    %103 = vector.shape_cast %102 : vector<1x32x128xbf16> to vector<32x128xbf16>
    %cst_104 = arith.constant dense<0.000000e+00> : vector<2x128xf32>
    %104 = tpu.matmul %101, %103, %cst_104 {dimension_numbers = #tpu.dot_dimension_numbers<[1], [0], [0], [1], [0, 0, 1, 1], [], []>} : vector<2x32xbf16>, vector<32x128xbf16>, vector<2x128xf32> -> vector<2x128xf32>
    %105 = arith.addf %98, %104 : vector<2x128xf32>
    %c0_105 = arith.constant 0 : index
    %c15 = arith.constant 15 : index
    %c0_106 = arith.constant 0 : index
    %c0_107 = arith.constant 0 : index
    %106 = vector.load %arg1[%c0_105, %c15, %c0_106, %c0_107] : memref<1x32x2x32xf32, #tpu.memory_space<vmem>>, vector<1x1x2x32xf32>
    %107 = vector.shape_cast %106 : vector<1x1x2x32xf32> to vector<2x32xf32>
    %108 = arith.truncf %107 : vector<2x32xf32> to vector<2x32xbf16>
    %c15_108 = arith.constant 15 : index
    %c0_109 = arith.constant 0 : index
    %c0_110 = arith.constant 0 : index
    %109 = vector.load %arg2[%c15_108, %c0_109, %c0_110] : memref<32x32x128xbf16, #tpu.memory_space<vmem>>, vector<1x32x128xbf16>
    %110 = vector.shape_cast %109 : vector<1x32x128xbf16> to vector<32x128xbf16>
    %cst_111 = arith.constant dense<0.000000e+00> : vector<2x128xf32>
    %111 = tpu.matmul %108, %110, %cst_111 {dimension_numbers = #tpu.dot_dimension_numbers<[1], [0], [0], [1], [0, 0, 1, 1], [], []>} : vector<2x32xbf16>, vector<32x128xbf16>, vector<2x128xf32> -> vector<2x128xf32>
    %112 = arith.addf %105, %111 : vector<2x128xf32>
    %c0_112 = arith.constant 0 : index
    %c16 = arith.constant 16 : index
    %c0_113 = arith.constant 0 : index
    %c0_114 = arith.constant 0 : index
    %113 = vector.load %arg1[%c0_112, %c16, %c0_113, %c0_114] : memref<1x32x2x32xf32, #tpu.memory_space<vmem>>, vector<1x1x2x32xf32>
    %114 = vector.shape_cast %113 : vector<1x1x2x32xf32> to vector<2x32xf32>
    %115 = arith.truncf %114 : vector<2x32xf32> to vector<2x32xbf16>
    %c16_115 = arith.constant 16 : index
    %c0_116 = arith.constant 0 : index
    %c0_117 = arith.constant 0 : index
    %116 = vector.load %arg2[%c16_115, %c0_116, %c0_117] : memref<32x32x128xbf16, #tpu.memory_space<vmem>>, vector<1x32x128xbf16>
    %117 = vector.shape_cast %116 : vector<1x32x128xbf16> to vector<32x128xbf16>
    %cst_118 = arith.constant dense<0.000000e+00> : vector<2x128xf32>
    %118 = tpu.matmul %115, %117, %cst_118 {dimension_numbers = #tpu.dot_dimension_numbers<[1], [0], [0], [1], [0, 0, 1, 1], [], []>} : vector<2x32xbf16>, vector<32x128xbf16>, vector<2x128xf32> -> vector<2x128xf32>
    %119 = arith.addf %112, %118 : vector<2x128xf32>
    %c0_119 = arith.constant 0 : index
    %c17 = arith.constant 17 : index
    %c0_120 = arith.constant 0 : index
    %c0_121 = arith.constant 0 : index
    %120 = vector.load %arg1[%c0_119, %c17, %c0_120, %c0_121] : memref<1x32x2x32xf32, #tpu.memory_space<vmem>>, vector<1x1x2x32xf32>
    %121 = vector.shape_cast %120 : vector<1x1x2x32xf32> to vector<2x32xf32>
    %122 = arith.truncf %121 : vector<2x32xf32> to vector<2x32xbf16>
    %c17_122 = arith.constant 17 : index
    %c0_123 = arith.constant 0 : index
    %c0_124 = arith.constant 0 : index
    %123 = vector.load %arg2[%c17_122, %c0_123, %c0_124] : memref<32x32x128xbf16, #tpu.memory_space<vmem>>, vector<1x32x128xbf16>
    %124 = vector.shape_cast %123 : vector<1x32x128xbf16> to vector<32x128xbf16>
    %cst_125 = arith.constant dense<0.000000e+00> : vector<2x128xf32>
    %125 = tpu.matmul %122, %124, %cst_125 {dimension_numbers = #tpu.dot_dimension_numbers<[1], [0], [0], [1], [0, 0, 1, 1], [], []>} : vector<2x32xbf16>, vector<32x128xbf16>, vector<2x128xf32> -> vector<2x128xf32>
    %126 = arith.addf %119, %125 : vector<2x128xf32>
    %c0_126 = arith.constant 0 : index
    %c18 = arith.constant 18 : index
    %c0_127 = arith.constant 0 : index
    %c0_128 = arith.constant 0 : index
    %127 = vector.load %arg1[%c0_126, %c18, %c0_127, %c0_128] : memref<1x32x2x32xf32, #tpu.memory_space<vmem>>, vector<1x1x2x32xf32>
    %128 = vector.shape_cast %127 : vector<1x1x2x32xf32> to vector<2x32xf32>
    %129 = arith.truncf %128 : vector<2x32xf32> to vector<2x32xbf16>
    %c18_129 = arith.constant 18 : index
    %c0_130 = arith.constant 0 : index
    %c0_131 = arith.constant 0 : index
    %130 = vector.load %arg2[%c18_129, %c0_130, %c0_131] : memref<32x32x128xbf16, #tpu.memory_space<vmem>>, vector<1x32x128xbf16>
    %131 = vector.shape_cast %130 : vector<1x32x128xbf16> to vector<32x128xbf16>
    %cst_132 = arith.constant dense<0.000000e+00> : vector<2x128xf32>
    %132 = tpu.matmul %129, %131, %cst_132 {dimension_numbers = #tpu.dot_dimension_numbers<[1], [0], [0], [1], [0, 0, 1, 1], [], []>} : vector<2x32xbf16>, vector<32x128xbf16>, vector<2x128xf32> -> vector<2x128xf32>
    %133 = arith.addf %126, %132 : vector<2x128xf32>
    %c0_133 = arith.constant 0 : index
    %c19 = arith.constant 19 : index
    %c0_134 = arith.constant 0 : index
    %c0_135 = arith.constant 0 : index
    %134 = vector.load %arg1[%c0_133, %c19, %c0_134, %c0_135] : memref<1x32x2x32xf32, #tpu.memory_space<vmem>>, vector<1x1x2x32xf32>
    %135 = vector.shape_cast %134 : vector<1x1x2x32xf32> to vector<2x32xf32>
    %136 = arith.truncf %135 : vector<2x32xf32> to vector<2x32xbf16>
    %c19_136 = arith.constant 19 : index
    %c0_137 = arith.constant 0 : index
    %c0_138 = arith.constant 0 : index
    %137 = vector.load %arg2[%c19_136, %c0_137, %c0_138] : memref<32x32x128xbf16, #tpu.memory_space<vmem>>, vector<1x32x128xbf16>
    %138 = vector.shape_cast %137 : vector<1x32x128xbf16> to vector<32x128xbf16>
    %cst_139 = arith.constant dense<0.000000e+00> : vector<2x128xf32>
    %139 = tpu.matmul %136, %138, %cst_139 {dimension_numbers = #tpu.dot_dimension_numbers<[1], [0], [0], [1], [0, 0, 1, 1], [], []>} : vector<2x32xbf16>, vector<32x128xbf16>, vector<2x128xf32> -> vector<2x128xf32>
    %140 = arith.addf %133, %139 : vector<2x128xf32>
    %c0_140 = arith.constant 0 : index
    %c20 = arith.constant 20 : index
    %c0_141 = arith.constant 0 : index
    %c0_142 = arith.constant 0 : index
    %141 = vector.load %arg1[%c0_140, %c20, %c0_141, %c0_142] : memref<1x32x2x32xf32, #tpu.memory_space<vmem>>, vector<1x1x2x32xf32>
    %142 = vector.shape_cast %141 : vector<1x1x2x32xf32> to vector<2x32xf32>
    %143 = arith.truncf %142 : vector<2x32xf32> to vector<2x32xbf16>
    %c20_143 = arith.constant 20 : index
    %c0_144 = arith.constant 0 : index
    %c0_145 = arith.constant 0 : index
    %144 = vector.load %arg2[%c20_143, %c0_144, %c0_145] : memref<32x32x128xbf16, #tpu.memory_space<vmem>>, vector<1x32x128xbf16>
    %145 = vector.shape_cast %144 : vector<1x32x128xbf16> to vector<32x128xbf16>
    %cst_146 = arith.constant dense<0.000000e+00> : vector<2x128xf32>
    %146 = tpu.matmul %143, %145, %cst_146 {dimension_numbers = #tpu.dot_dimension_numbers<[1], [0], [0], [1], [0, 0, 1, 1], [], []>} : vector<2x32xbf16>, vector<32x128xbf16>, vector<2x128xf32> -> vector<2x128xf32>
    %147 = arith.addf %140, %146 : vector<2x128xf32>
    %c0_147 = arith.constant 0 : index
    %c21 = arith.constant 21 : index
    %c0_148 = arith.constant 0 : index
    %c0_149 = arith.constant 0 : index
    %148 = vector.load %arg1[%c0_147, %c21, %c0_148, %c0_149] : memref<1x32x2x32xf32, #tpu.memory_space<vmem>>, vector<1x1x2x32xf32>
    %149 = vector.shape_cast %148 : vector<1x1x2x32xf32> to vector<2x32xf32>
    %150 = arith.truncf %149 : vector<2x32xf32> to vector<2x32xbf16>
    %c21_150 = arith.constant 21 : index
    %c0_151 = arith.constant 0 : index
    %c0_152 = arith.constant 0 : index
    %151 = vector.load %arg2[%c21_150, %c0_151, %c0_152] : memref<32x32x128xbf16, #tpu.memory_space<vmem>>, vector<1x32x128xbf16>
    %152 = vector.shape_cast %151 : vector<1x32x128xbf16> to vector<32x128xbf16>
    %cst_153 = arith.constant dense<0.000000e+00> : vector<2x128xf32>
    %153 = tpu.matmul %150, %152, %cst_153 {dimension_numbers = #tpu.dot_dimension_numbers<[1], [0], [0], [1], [0, 0, 1, 1], [], []>} : vector<2x32xbf16>, vector<32x128xbf16>, vector<2x128xf32> -> vector<2x128xf32>
    %154 = arith.addf %147, %153 : vector<2x128xf32>
    %c0_154 = arith.constant 0 : index
    %c22 = arith.constant 22 : index
    %c0_155 = arith.constant 0 : index
    %c0_156 = arith.constant 0 : index
    %155 = vector.load %arg1[%c0_154, %c22, %c0_155, %c0_156] : memref<1x32x2x32xf32, #tpu.memory_space<vmem>>, vector<1x1x2x32xf32>
    %156 = vector.shape_cast %155 : vector<1x1x2x32xf32> to vector<2x32xf32>
    %157 = arith.truncf %156 : vector<2x32xf32> to vector<2x32xbf16>
    %c22_157 = arith.constant 22 : index
    %c0_158 = arith.constant 0 : index
    %c0_159 = arith.constant 0 : index
    %158 = vector.load %arg2[%c22_157, %c0_158, %c0_159] : memref<32x32x128xbf16, #tpu.memory_space<vmem>>, vector<1x32x128xbf16>
    %159 = vector.shape_cast %158 : vector<1x32x128xbf16> to vector<32x128xbf16>
    %cst_160 = arith.constant dense<0.000000e+00> : vector<2x128xf32>
    %160 = tpu.matmul %157, %159, %cst_160 {dimension_numbers = #tpu.dot_dimension_numbers<[1], [0], [0], [1], [0, 0, 1, 1], [], []>} : vector<2x32xbf16>, vector<32x128xbf16>, vector<2x128xf32> -> vector<2x128xf32>
    %161 = arith.addf %154, %160 : vector<2x128xf32>
    %c0_161 = arith.constant 0 : index
    %c23 = arith.constant 23 : index
    %c0_162 = arith.constant 0 : index
    %c0_163 = arith.constant 0 : index
    %162 = vector.load %arg1[%c0_161, %c23, %c0_162, %c0_163] : memref<1x32x2x32xf32, #tpu.memory_space<vmem>>, vector<1x1x2x32xf32>
    %163 = vector.shape_cast %162 : vector<1x1x2x32xf32> to vector<2x32xf32>
    %164 = arith.truncf %163 : vector<2x32xf32> to vector<2x32xbf16>
    %c23_164 = arith.constant 23 : index
    %c0_165 = arith.constant 0 : index
    %c0_166 = arith.constant 0 : index
    %165 = vector.load %arg2[%c23_164, %c0_165, %c0_166] : memref<32x32x128xbf16, #tpu.memory_space<vmem>>, vector<1x32x128xbf16>
    %166 = vector.shape_cast %165 : vector<1x32x128xbf16> to vector<32x128xbf16>
    %cst_167 = arith.constant dense<0.000000e+00> : vector<2x128xf32>
    %167 = tpu.matmul %164, %166, %cst_167 {dimension_numbers = #tpu.dot_dimension_numbers<[1], [0], [0], [1], [0, 0, 1, 1], [], []>} : vector<2x32xbf16>, vector<32x128xbf16>, vector<2x128xf32> -> vector<2x128xf32>
    %168 = arith.addf %161, %167 : vector<2x128xf32>
    %c0_168 = arith.constant 0 : index
    %c24 = arith.constant 24 : index
    %c0_169 = arith.constant 0 : index
    %c0_170 = arith.constant 0 : index
    %169 = vector.load %arg1[%c0_168, %c24, %c0_169, %c0_170] : memref<1x32x2x32xf32, #tpu.memory_space<vmem>>, vector<1x1x2x32xf32>
    %170 = vector.shape_cast %169 : vector<1x1x2x32xf32> to vector<2x32xf32>
    %171 = arith.truncf %170 : vector<2x32xf32> to vector<2x32xbf16>
    %c24_171 = arith.constant 24 : index
    %c0_172 = arith.constant 0 : index
    %c0_173 = arith.constant 0 : index
    %172 = vector.load %arg2[%c24_171, %c0_172, %c0_173] : memref<32x32x128xbf16, #tpu.memory_space<vmem>>, vector<1x32x128xbf16>
    %173 = vector.shape_cast %172 : vector<1x32x128xbf16> to vector<32x128xbf16>
    %cst_174 = arith.constant dense<0.000000e+00> : vector<2x128xf32>
    %174 = tpu.matmul %171, %173, %cst_174 {dimension_numbers = #tpu.dot_dimension_numbers<[1], [0], [0], [1], [0, 0, 1, 1], [], []>} : vector<2x32xbf16>, vector<32x128xbf16>, vector<2x128xf32> -> vector<2x128xf32>
    %175 = arith.addf %168, %174 : vector<2x128xf32>
    %c0_175 = arith.constant 0 : index
    %c25 = arith.constant 25 : index
    %c0_176 = arith.constant 0 : index
    %c0_177 = arith.constant 0 : index
    %176 = vector.load %arg1[%c0_175, %c25, %c0_176, %c0_177] : memref<1x32x2x32xf32, #tpu.memory_space<vmem>>, vector<1x1x2x32xf32>
    %177 = vector.shape_cast %176 : vector<1x1x2x32xf32> to vector<2x32xf32>
    %178 = arith.truncf %177 : vector<2x32xf32> to vector<2x32xbf16>
    %c25_178 = arith.constant 25 : index
    %c0_179 = arith.constant 0 : index
    %c0_180 = arith.constant 0 : index
    %179 = vector.load %arg2[%c25_178, %c0_179, %c0_180] : memref<32x32x128xbf16, #tpu.memory_space<vmem>>, vector<1x32x128xbf16>
    %180 = vector.shape_cast %179 : vector<1x32x128xbf16> to vector<32x128xbf16>
    %cst_181 = arith.constant dense<0.000000e+00> : vector<2x128xf32>
    %181 = tpu.matmul %178, %180, %cst_181 {dimension_numbers = #tpu.dot_dimension_numbers<[1], [0], [0], [1], [0, 0, 1, 1], [], []>} : vector<2x32xbf16>, vector<32x128xbf16>, vector<2x128xf32> -> vector<2x128xf32>
    %182 = arith.addf %175, %181 : vector<2x128xf32>
    %c0_182 = arith.constant 0 : index
    %c26 = arith.constant 26 : index
    %c0_183 = arith.constant 0 : index
    %c0_184 = arith.constant 0 : index
    %183 = vector.load %arg1[%c0_182, %c26, %c0_183, %c0_184] : memref<1x32x2x32xf32, #tpu.memory_space<vmem>>, vector<1x1x2x32xf32>
    %184 = vector.shape_cast %183 : vector<1x1x2x32xf32> to vector<2x32xf32>
    %185 = arith.truncf %184 : vector<2x32xf32> to vector<2x32xbf16>
    %c26_185 = arith.constant 26 : index
    %c0_186 = arith.constant 0 : index
    %c0_187 = arith.constant 0 : index
    %186 = vector.load %arg2[%c26_185, %c0_186, %c0_187] : memref<32x32x128xbf16, #tpu.memory_space<vmem>>, vector<1x32x128xbf16>
    %187 = vector.shape_cast %186 : vector<1x32x128xbf16> to vector<32x128xbf16>
    %cst_188 = arith.constant dense<0.000000e+00> : vector<2x128xf32>
    %188 = tpu.matmul %185, %187, %cst_188 {dimension_numbers = #tpu.dot_dimension_numbers<[1], [0], [0], [1], [0, 0, 1, 1], [], []>} : vector<2x32xbf16>, vector<32x128xbf16>, vector<2x128xf32> -> vector<2x128xf32>
    %189 = arith.addf %182, %188 : vector<2x128xf32>
    %c0_189 = arith.constant 0 : index
    %c27 = arith.constant 27 : index
    %c0_190 = arith.constant 0 : index
    %c0_191 = arith.constant 0 : index
    %190 = vector.load %arg1[%c0_189, %c27, %c0_190, %c0_191] : memref<1x32x2x32xf32, #tpu.memory_space<vmem>>, vector<1x1x2x32xf32>
    %191 = vector.shape_cast %190 : vector<1x1x2x32xf32> to vector<2x32xf32>
    %192 = arith.truncf %191 : vector<2x32xf32> to vector<2x32xbf16>
    %c27_192 = arith.constant 27 : index
    %c0_193 = arith.constant 0 : index
    %c0_194 = arith.constant 0 : index
    %193 = vector.load %arg2[%c27_192, %c0_193, %c0_194] : memref<32x32x128xbf16, #tpu.memory_space<vmem>>, vector<1x32x128xbf16>
    %194 = vector.shape_cast %193 : vector<1x32x128xbf16> to vector<32x128xbf16>
    %cst_195 = arith.constant dense<0.000000e+00> : vector<2x128xf32>
    %195 = tpu.matmul %192, %194, %cst_195 {dimension_numbers = #tpu.dot_dimension_numbers<[1], [0], [0], [1], [0, 0, 1, 1], [], []>} : vector<2x32xbf16>, vector<32x128xbf16>, vector<2x128xf32> -> vector<2x128xf32>
    %196 = arith.addf %189, %195 : vector<2x128xf32>
    %c0_196 = arith.constant 0 : index
    %c28 = arith.constant 28 : index
    %c0_197 = arith.constant 0 : index
    %c0_198 = arith.constant 0 : index
    %197 = vector.load %arg1[%c0_196, %c28, %c0_197, %c0_198] : memref<1x32x2x32xf32, #tpu.memory_space<vmem>>, vector<1x1x2x32xf32>
    %198 = vector.shape_cast %197 : vector<1x1x2x32xf32> to vector<2x32xf32>
    %199 = arith.truncf %198 : vector<2x32xf32> to vector<2x32xbf16>
    %c28_199 = arith.constant 28 : index
    %c0_200 = arith.constant 0 : index
    %c0_201 = arith.constant 0 : index
    %200 = vector.load %arg2[%c28_199, %c0_200, %c0_201] : memref<32x32x128xbf16, #tpu.memory_space<vmem>>, vector<1x32x128xbf16>
    %201 = vector.shape_cast %200 : vector<1x32x128xbf16> to vector<32x128xbf16>
    %cst_202 = arith.constant dense<0.000000e+00> : vector<2x128xf32>
    %202 = tpu.matmul %199, %201, %cst_202 {dimension_numbers = #tpu.dot_dimension_numbers<[1], [0], [0], [1], [0, 0, 1, 1], [], []>} : vector<2x32xbf16>, vector<32x128xbf16>, vector<2x128xf32> -> vector<2x128xf32>
    %203 = arith.addf %196, %202 : vector<2x128xf32>
    %c0_203 = arith.constant 0 : index
    %c29 = arith.constant 29 : index
    %c0_204 = arith.constant 0 : index
    %c0_205 = arith.constant 0 : index
    %204 = vector.load %arg1[%c0_203, %c29, %c0_204, %c0_205] : memref<1x32x2x32xf32, #tpu.memory_space<vmem>>, vector<1x1x2x32xf32>
    %205 = vector.shape_cast %204 : vector<1x1x2x32xf32> to vector<2x32xf32>
    %206 = arith.truncf %205 : vector<2x32xf32> to vector<2x32xbf16>
    %c29_206 = arith.constant 29 : index
    %c0_207 = arith.constant 0 : index
    %c0_208 = arith.constant 0 : index
    %207 = vector.load %arg2[%c29_206, %c0_207, %c0_208] : memref<32x32x128xbf16, #tpu.memory_space<vmem>>, vector<1x32x128xbf16>
    %208 = vector.shape_cast %207 : vector<1x32x128xbf16> to vector<32x128xbf16>
    %cst_209 = arith.constant dense<0.000000e+00> : vector<2x128xf32>
    %209 = tpu.matmul %206, %208, %cst_209 {dimension_numbers = #tpu.dot_dimension_numbers<[1], [0], [0], [1], [0, 0, 1, 1], [], []>} : vector<2x32xbf16>, vector<32x128xbf16>, vector<2x128xf32> -> vector<2x128xf32>
    %210 = arith.addf %203, %209 : vector<2x128xf32>
    %c0_210 = arith.constant 0 : index
    %c30 = arith.constant 30 : index
    %c0_211 = arith.constant 0 : index
    %c0_212 = arith.constant 0 : index
    %211 = vector.load %arg1[%c0_210, %c30, %c0_211, %c0_212] : memref<1x32x2x32xf32, #tpu.memory_space<vmem>>, vector<1x1x2x32xf32>
    %212 = vector.shape_cast %211 : vector<1x1x2x32xf32> to vector<2x32xf32>
    %213 = arith.truncf %212 : vector<2x32xf32> to vector<2x32xbf16>
    %c30_213 = arith.constant 30 : index
    %c0_214 = arith.constant 0 : index
    %c0_215 = arith.constant 0 : index
    %214 = vector.load %arg2[%c30_213, %c0_214, %c0_215] : memref<32x32x128xbf16, #tpu.memory_space<vmem>>, vector<1x32x128xbf16>
    %215 = vector.shape_cast %214 : vector<1x32x128xbf16> to vector<32x128xbf16>
    %cst_216 = arith.constant dense<0.000000e+00> : vector<2x128xf32>
    %216 = tpu.matmul %213, %215, %cst_216 {dimension_numbers = #tpu.dot_dimension_numbers<[1], [0], [0], [1], [0, 0, 1, 1], [], []>} : vector<2x32xbf16>, vector<32x128xbf16>, vector<2x128xf32> -> vector<2x128xf32>
    %217 = arith.addf %210, %216 : vector<2x128xf32>
    %c0_217 = arith.constant 0 : index
    %c31 = arith.constant 31 : index
    %c0_218 = arith.constant 0 : index
    %c0_219 = arith.constant 0 : index
    %218 = vector.load %arg1[%c0_217, %c31, %c0_218, %c0_219] : memref<1x32x2x32xf32, #tpu.memory_space<vmem>>, vector<1x1x2x32xf32>
    %219 = vector.shape_cast %218 : vector<1x1x2x32xf32> to vector<2x32xf32>
    %220 = arith.truncf %219 : vector<2x32xf32> to vector<2x32xbf16>
    %c31_220 = arith.constant 31 : index
    %c0_221 = arith.constant 0 : index
    %c0_222 = arith.constant 0 : index
    %221 = vector.load %arg2[%c31_220, %c0_221, %c0_222] : memref<32x32x128xbf16, #tpu.memory_space<vmem>>, vector<1x32x128xbf16>
    %222 = vector.shape_cast %221 : vector<1x32x128xbf16> to vector<32x128xbf16>
    %cst_223 = arith.constant dense<0.000000e+00> : vector<2x128xf32>
    %223 = tpu.matmul %220, %222, %cst_223 {dimension_numbers = #tpu.dot_dimension_numbers<[1], [0], [0], [1], [0, 0, 1, 1], [], []>} : vector<2x32xbf16>, vector<32x128xbf16>, vector<2x128xf32> -> vector<2x128xf32>
    %224 = arith.addf %217, %223 : vector<2x128xf32>
    %c0_224 = arith.constant 0 : index
    %c0_225 = arith.constant 0 : index
    %225 = vector.load %arg3[%c0_224, %c0_225] : memref<1x128xf32, #tpu.memory_space<vmem>>, vector<1x128xf32>
    %226 = vector.broadcast %225 : vector<1x128xf32> to vector<2x128xf32>
    %227 = arith.addf %224, %226 : vector<2x128xf32>
    %228 = arith.truncf %227 : vector<2x128xf32> to vector<2x128xbf16>
    %c0_226 = arith.constant 0 : index
    %c0_227 = arith.constant 0 : index
    %c0_228 = arith.constant 0 : index
    %229 = vector.load %arg4[%c0_226, %c0_227, %c0_228] : memref<1x2x128xbf16, #tpu.memory_space<vmem>>, vector<1x2x128xbf16>
    %230 = vector.shape_cast %229 : vector<1x2x128xbf16> to vector<2x128xbf16>
    %231 = vector.shape_cast %228 : vector<2x128xbf16> to vector<1x2x128xbf16>
    tpu.vector_store %arg4[%c0_226, %c0_227, %c0_228], %231 {strides = array<i32>} : memref<1x2x128xbf16, #tpu.memory_space<vmem>>, vector<1x2x128xbf16>,
    return
  }
  func.func @transform_0(%arg0: i32) -> (i32, i32, i32, i32) {
    %c0_i32 = arith.constant 0 : i32
    %c0_i32_0 = arith.constant 0 : i32
    %c0_i32_1 = arith.constant 0 : i32
    %c0_i32_2 = arith.constant 0 : i32
    return %arg0, %c0_i32, %c0_i32_0, %c0_i32_1 : i32, i32, i32, i32
  }
  func.func @transform_1(%arg0: i32) -> (i32, i32, i32) {
    %c0_i32 = arith.constant 0 : i32
    %c0_i32_0 = arith.constant 0 : i32
    %c0_i32_1 = arith.constant 0 : i32
    %c0_i32_2 = arith.constant 0 : i32
    return %c0_i32, %c0_i32_0, %c0_i32_1 : i32, i32, i32
  }
  func.func @transform_2(%arg0: i32) -> (i32, i32) {
    %c0_i32 = arith.constant 0 : i32
    %c0_i32_0 = arith.constant 0 : i32
    %c0_i32_1 = arith.constant 0 : i32
    return %c0_i32, %c0_i32_0 : i32, i32
  }
  func.func @transform_3(%arg0: i32) -> (i32, i32, i32) {
    %c0_i32 = arith.constant 0 : i32
    %c0_i32_0 = arith.constant 0 : i32
    %c0_i32_1 = arith.constant 0 : i32
    return %arg0, %c0_i32, %c0_i32_0 : i32, i32, i32
  }
}

module attributes {stable_mosaic.version = 11 : i64} {
  func.func @head_kernel(%arg0: i32, %arg1: i32, %arg2: memref<1x1x4x128xbf16, #tpu.memory_space<vmem>>, %arg3: memref<1x1x4x128xbf16, #tpu.memory_space<vmem>>, %arg4: memref<1x1x4x128xbf16, #tpu.memory_space<vmem>>, %arg5: memref<9x128x8xbf16, #tpu.memory_space<vmem>>, %arg6: memref<1x8xf32, #tpu.memory_space<vmem>>, %arg7: memref<1x1x2x8xf32, #tpu.memory_space<vmem>>) attributes {dimension_semantics = [#tpu.dimension_semantics<parallel>, #tpu.dimension_semantics<parallel>], iteration_bounds = array<i64: 2, 2>, scalar_prefetch = 0 : i64, scratch_operands = 0 : i64, tpu.core_type = #tpu.core_type<tc>, window_params = [{transform_indices = @transform_0, window_bounds = array<i64: 1, 1, 4, 128>}, {transform_indices = @transform_1, window_bounds = array<i64: 1, 1, 4, 128>}, {transform_indices = @transform_2, window_bounds = array<i64: 1, 1, 4, 128>}, {pipeline_mode = #tpu.pipeline_mode<synchronous>, transform_indices = @transform_3, window_bounds = array<i64: 9, 128, 8>}, {pipeline_mode = #tpu.pipeline_mode<synchronous>, transform_indices = @transform_4, window_bounds = array<i64: 1, 8>}, {transform_indices = @transform_5, window_bounds = array<i64: 1, 1, 2, 8>}]} {
    %cst = arith.constant 0.000000e+00 : f32
    %0 = vector.broadcast %cst : f32 to vector<2x8xf32>
    %c0 = arith.constant 0 : index
    %c0_0 = arith.constant 0 : index
    %c0_1 = arith.constant 0 : index
    %c0_2 = arith.constant 0 : index
    %1 = vector.load %arg2[%c0, %c0_0, %c0_1, %c0_2] : memref<1x1x4x128xbf16, #tpu.memory_space<vmem>>, vector<1x1x4x128xbf16>
    %2 = vector.shape_cast %1 : vector<1x1x4x128xbf16> to vector<4x128xbf16>
    %3 = vector.extract_strided_slice %2 {offsets = [0, 0], sizes = [2, 128], strides = [1, 1]} : vector<4x128xbf16> to vector<2x128xbf16>
    %c0_3 = arith.constant 0 : index
    %c0_4 = arith.constant 0 : index
    %c0_5 = arith.constant 0 : index
    %4 = vector.load %arg5[%c0_3, %c0_4, %c0_5] : memref<9x128x8xbf16, #tpu.memory_space<vmem>>, vector<1x128x8xbf16>
    %5 = vector.shape_cast %4 : vector<1x128x8xbf16> to vector<128x8xbf16>
    %cst_6 = arith.constant dense<0.000000e+00> : vector<2x8xf32>
    %6 = tpu.matmul %3, %5, %cst_6 {dimension_numbers = #tpu.dot_dimension_numbers<[1], [0], [0], [1], [0, 0, 1, 1], [], []>} : vector<2x128xbf16>, vector<128x8xbf16>, vector<2x8xf32> -> vector<2x8xf32>
    %7 = arith.addf %0, %6 : vector<2x8xf32>
    %8 = vector.extract_strided_slice %2 {offsets = [1, 0], sizes = [2, 128], strides = [1, 1]} : vector<4x128xbf16> to vector<2x128xbf16>
    %c1 = arith.constant 1 : index
    %c0_7 = arith.constant 0 : index
    %c0_8 = arith.constant 0 : index
    %9 = vector.load %arg5[%c1, %c0_7, %c0_8] : memref<9x128x8xbf16, #tpu.memory_space<vmem>>, vector<1x128x8xbf16>
    %10 = vector.shape_cast %9 : vector<1x128x8xbf16> to vector<128x8xbf16>
    %cst_9 = arith.constant dense<0.000000e+00> : vector<2x8xf32>
    %11 = tpu.matmul %8, %10, %cst_9 {dimension_numbers = #tpu.dot_dimension_numbers<[1], [0], [0], [1], [0, 0, 1, 1], [], []>} : vector<2x128xbf16>, vector<128x8xbf16>, vector<2x8xf32> -> vector<2x8xf32>
    %12 = arith.addf %7, %11 : vector<2x8xf32>
    %13 = vector.extract_strided_slice %2 {offsets = [2, 0], sizes = [2, 128], strides = [1, 1]} : vector<4x128xbf16> to vector<2x128xbf16>
    %c2 = arith.constant 2 : index
    %c0_10 = arith.constant 0 : index
    %c0_11 = arith.constant 0 : index
    %14 = vector.load %arg5[%c2, %c0_10, %c0_11] : memref<9x128x8xbf16, #tpu.memory_space<vmem>>, vector<1x128x8xbf16>
    %15 = vector.shape_cast %14 : vector<1x128x8xbf16> to vector<128x8xbf16>
    %cst_12 = arith.constant dense<0.000000e+00> : vector<2x8xf32>
    %16 = tpu.matmul %13, %15, %cst_12 {dimension_numbers = #tpu.dot_dimension_numbers<[1], [0], [0], [1], [0, 0, 1, 1], [], []>} : vector<2x128xbf16>, vector<128x8xbf16>, vector<2x8xf32> -> vector<2x8xf32>
    %17 = arith.addf %12, %16 : vector<2x8xf32>
    %c0_13 = arith.constant 0 : index
    %c0_14 = arith.constant 0 : index
    %c0_15 = arith.constant 0 : index
    %c0_16 = arith.constant 0 : index
    %18 = vector.load %arg3[%c0_13, %c0_14, %c0_15, %c0_16] : memref<1x1x4x128xbf16, #tpu.memory_space<vmem>>, vector<1x1x4x128xbf16>
    %19 = vector.shape_cast %18 : vector<1x1x4x128xbf16> to vector<4x128xbf16>
    %20 = vector.extract_strided_slice %19 {offsets = [0, 0], sizes = [2, 128], strides = [1, 1]} : vector<4x128xbf16> to vector<2x128xbf16>
    %c3 = arith.constant 3 : index
    %c0_17 = arith.constant 0 : index
    %c0_18 = arith.constant 0 : index
    %21 = vector.load %arg5[%c3, %c0_17, %c0_18] : memref<9x128x8xbf16, #tpu.memory_space<vmem>>, vector<1x128x8xbf16>
    %22 = vector.shape_cast %21 : vector<1x128x8xbf16> to vector<128x8xbf16>
    %cst_19 = arith.constant dense<0.000000e+00> : vector<2x8xf32>
    %23 = tpu.matmul %20, %22, %cst_19 {dimension_numbers = #tpu.dot_dimension_numbers<[1], [0], [0], [1], [0, 0, 1, 1], [], []>} : vector<2x128xbf16>, vector<128x8xbf16>, vector<2x8xf32> -> vector<2x8xf32>
    %24 = arith.addf %17, %23 : vector<2x8xf32>
    %25 = vector.extract_strided_slice %19 {offsets = [1, 0], sizes = [2, 128], strides = [1, 1]} : vector<4x128xbf16> to vector<2x128xbf16>
    %c4 = arith.constant 4 : index
    %c0_20 = arith.constant 0 : index
    %c0_21 = arith.constant 0 : index
    %26 = vector.load %arg5[%c4, %c0_20, %c0_21] : memref<9x128x8xbf16, #tpu.memory_space<vmem>>, vector<1x128x8xbf16>
    %27 = vector.shape_cast %26 : vector<1x128x8xbf16> to vector<128x8xbf16>
    %cst_22 = arith.constant dense<0.000000e+00> : vector<2x8xf32>
    %28 = tpu.matmul %25, %27, %cst_22 {dimension_numbers = #tpu.dot_dimension_numbers<[1], [0], [0], [1], [0, 0, 1, 1], [], []>} : vector<2x128xbf16>, vector<128x8xbf16>, vector<2x8xf32> -> vector<2x8xf32>
    %29 = arith.addf %24, %28 : vector<2x8xf32>
    %30 = vector.extract_strided_slice %19 {offsets = [2, 0], sizes = [2, 128], strides = [1, 1]} : vector<4x128xbf16> to vector<2x128xbf16>
    %c5 = arith.constant 5 : index
    %c0_23 = arith.constant 0 : index
    %c0_24 = arith.constant 0 : index
    %31 = vector.load %arg5[%c5, %c0_23, %c0_24] : memref<9x128x8xbf16, #tpu.memory_space<vmem>>, vector<1x128x8xbf16>
    %32 = vector.shape_cast %31 : vector<1x128x8xbf16> to vector<128x8xbf16>
    %cst_25 = arith.constant dense<0.000000e+00> : vector<2x8xf32>
    %33 = tpu.matmul %30, %32, %cst_25 {dimension_numbers = #tpu.dot_dimension_numbers<[1], [0], [0], [1], [0, 0, 1, 1], [], []>} : vector<2x128xbf16>, vector<128x8xbf16>, vector<2x8xf32> -> vector<2x8xf32>
    %34 = arith.addf %29, %33 : vector<2x8xf32>
    %c0_26 = arith.constant 0 : index
    %c0_27 = arith.constant 0 : index
    %c0_28 = arith.constant 0 : index
    %c0_29 = arith.constant 0 : index
    %35 = vector.load %arg4[%c0_26, %c0_27, %c0_28, %c0_29] : memref<1x1x4x128xbf16, #tpu.memory_space<vmem>>, vector<1x1x4x128xbf16>
    %36 = vector.shape_cast %35 : vector<1x1x4x128xbf16> to vector<4x128xbf16>
    %37 = vector.extract_strided_slice %36 {offsets = [0, 0], sizes = [2, 128], strides = [1, 1]} : vector<4x128xbf16> to vector<2x128xbf16>
    %c6 = arith.constant 6 : index
    %c0_30 = arith.constant 0 : index
    %c0_31 = arith.constant 0 : index
    %38 = vector.load %arg5[%c6, %c0_30, %c0_31] : memref<9x128x8xbf16, #tpu.memory_space<vmem>>, vector<1x128x8xbf16>
    %39 = vector.shape_cast %38 : vector<1x128x8xbf16> to vector<128x8xbf16>
    %cst_32 = arith.constant dense<0.000000e+00> : vector<2x8xf32>
    %40 = tpu.matmul %37, %39, %cst_32 {dimension_numbers = #tpu.dot_dimension_numbers<[1], [0], [0], [1], [0, 0, 1, 1], [], []>} : vector<2x128xbf16>, vector<128x8xbf16>, vector<2x8xf32> -> vector<2x8xf32>
    %41 = arith.addf %34, %40 : vector<2x8xf32>
    %42 = vector.extract_strided_slice %36 {offsets = [1, 0], sizes = [2, 128], strides = [1, 1]} : vector<4x128xbf16> to vector<2x128xbf16>
    %c7 = arith.constant 7 : index
    %c0_33 = arith.constant 0 : index
    %c0_34 = arith.constant 0 : index
    %43 = vector.load %arg5[%c7, %c0_33, %c0_34] : memref<9x128x8xbf16, #tpu.memory_space<vmem>>, vector<1x128x8xbf16>
    %44 = vector.shape_cast %43 : vector<1x128x8xbf16> to vector<128x8xbf16>
    %cst_35 = arith.constant dense<0.000000e+00> : vector<2x8xf32>
    %45 = tpu.matmul %42, %44, %cst_35 {dimension_numbers = #tpu.dot_dimension_numbers<[1], [0], [0], [1], [0, 0, 1, 1], [], []>} : vector<2x128xbf16>, vector<128x8xbf16>, vector<2x8xf32> -> vector<2x8xf32>
    %46 = arith.addf %41, %45 : vector<2x8xf32>
    %47 = vector.extract_strided_slice %36 {offsets = [2, 0], sizes = [2, 128], strides = [1, 1]} : vector<4x128xbf16> to vector<2x128xbf16>
    %c8 = arith.constant 8 : index
    %c0_36 = arith.constant 0 : index
    %c0_37 = arith.constant 0 : index
    %48 = vector.load %arg5[%c8, %c0_36, %c0_37] : memref<9x128x8xbf16, #tpu.memory_space<vmem>>, vector<1x128x8xbf16>
    %49 = vector.shape_cast %48 : vector<1x128x8xbf16> to vector<128x8xbf16>
    %cst_38 = arith.constant dense<0.000000e+00> : vector<2x8xf32>
    %50 = tpu.matmul %47, %49, %cst_38 {dimension_numbers = #tpu.dot_dimension_numbers<[1], [0], [0], [1], [0, 0, 1, 1], [], []>} : vector<2x128xbf16>, vector<128x8xbf16>, vector<2x8xf32> -> vector<2x8xf32>
    %51 = arith.addf %46, %50 : vector<2x8xf32>
    %c0_39 = arith.constant 0 : index
    %c0_40 = arith.constant 0 : index
    %52 = vector.load %arg6[%c0_39, %c0_40] : memref<1x8xf32, #tpu.memory_space<vmem>>, vector<1x8xf32>
    %53 = vector.broadcast %52 : vector<1x8xf32> to vector<2x8xf32>
    %54 = arith.addf %51, %53 : vector<2x8xf32>
    %c0_41 = arith.constant 0 : index
    %c0_42 = arith.constant 0 : index
    %c0_43 = arith.constant 0 : index
    %c0_44 = arith.constant 0 : index
    %55 = vector.load %arg7[%c0_41, %c0_42, %c0_43, %c0_44] : memref<1x1x2x8xf32, #tpu.memory_space<vmem>>, vector<1x1x2x8xf32>
    %56 = vector.shape_cast %55 : vector<1x1x2x8xf32> to vector<2x8xf32>
    %57 = vector.shape_cast %54 : vector<2x8xf32> to vector<1x1x2x8xf32>
    tpu.vector_store %arg7[%c0_41, %c0_42, %c0_43, %c0_44], %57 {strides = array<i32>} : memref<1x1x2x8xf32, #tpu.memory_space<vmem>>, vector<1x1x2x8xf32>,
    return
  }
  func.func @transform_0(%arg0: i32, %arg1: i32) -> (i32, i32, i32, i32) {
    %c0_i32 = arith.constant 0 : i32
    %0 = arith.addi %arg1, %c0_i32 : i32
    %c0_i32_0 = arith.constant 0 : i32
    %c0_i32_1 = arith.constant 0 : i32
    %c0_i32_2 = arith.constant 0 : i32
    return %arg0, %0, %c0_i32_0, %c0_i32_1 : i32, i32, i32, i32
  }
  func.func @transform_1(%arg0: i32, %arg1: i32) -> (i32, i32, i32, i32) {
    %c1_i32 = arith.constant 1 : i32
    %0 = arith.addi %arg1, %c1_i32 : i32
    %c0_i32 = arith.constant 0 : i32
    %c0_i32_0 = arith.constant 0 : i32
    %c0_i32_1 = arith.constant 0 : i32
    return %arg0, %0, %c0_i32, %c0_i32_0 : i32, i32, i32, i32
  }
  func.func @transform_2(%arg0: i32, %arg1: i32) -> (i32, i32, i32, i32) {
    %c2_i32 = arith.constant 2 : i32
    %0 = arith.addi %arg1, %c2_i32 : i32
    %c0_i32 = arith.constant 0 : i32
    %c0_i32_0 = arith.constant 0 : i32
    %c0_i32_1 = arith.constant 0 : i32
    return %arg0, %0, %c0_i32, %c0_i32_0 : i32, i32, i32, i32
  }
  func.func @transform_3(%arg0: i32, %arg1: i32) -> (i32, i32, i32) {
    %c0_i32 = arith.constant 0 : i32
    %c0_i32_0 = arith.constant 0 : i32
    %c0_i32_1 = arith.constant 0 : i32
    %c0_i32_2 = arith.constant 0 : i32
    return %c0_i32, %c0_i32_0, %c0_i32_1 : i32, i32, i32
  }
  func.func @transform_4(%arg0: i32, %arg1: i32) -> (i32, i32) {
    %c0_i32 = arith.constant 0 : i32
    %c0_i32_0 = arith.constant 0 : i32
    %c0_i32_1 = arith.constant 0 : i32
    return %c0_i32, %c0_i32_0 : i32, i32
  }
  func.func @transform_5(%arg0: i32, %arg1: i32) -> (i32, i32, i32, i32) {
    %c0_i32 = arith.constant 0 : i32
    %c0_i32_0 = arith.constant 0 : i32
    %c0_i32_1 = arith.constant 0 : i32
    return %arg0, %arg1, %c0_i32, %c0_i32_0 : i32, i32, i32, i32
  }
}

</mosaic_0001>

<llo_original>
// kernel: model_forward.3
$region0: #{model_forward.3}
  #allocation0 [shape = 'u32[]', space=smem, size = 0x4, offset = 0x4, fixed_abs, tag = 'smem constant byte address 0x4 - core index']
  #allocation1 [shape = 'u32[72,128]{1,0:T(1,128)}', space=vmem, size = 0x9000, scoped, tag = 'internal scratch']
  %s0 = inlined_call_operand.vmem [shape: bf16[2,4,4,128], index: 0, kind: input, shape index: {}, may-alias: {0,1,2}]
  %s1 = inlined_call_operand.vmem [shape: bf16[2,4,4,128], index: 1, kind: input, shape index: {}, may-alias: {0,1,2}]
  %s2 = inlined_call_operand.vmem [shape: bf16[2,4,4,128], index: 2, kind: input, shape index: {}, may-alias: {0,1,2}]
  %s3 = inlined_call_operand.vmem [shape: bf16[9,128,8], index: 3, kind: input, shape index: {}]
  %s4 = inlined_call_operand.vmem [shape: f32[1,8], index: 4, kind: input, shape index: {}]
  %s5 = inlined_call_operand.vmem [shape: f32[2,2,2,8], index: 5, kind: output, shape index: {}]
  %s6 = sld [smem:[#allocation0]]
  $region53: #{model_forward.3} parent=0
    _
  %s8 = ssub.s32 1, %s6
  %s9 = scalar_select 0, %s8, %s6
  loop: start=0, step=1, limit=6
  $region2: #{model_forward.3} parent=0 // loop_pre_header
    _
  $region3: #{model_forward.3} parent=0 // loop_header
    %s11 = sphi 0, %s15
    %p12 = scmp.ge.s32.totalorder %s11, 6
    %s18 = sphi 0, %s30
    %s19 = sphi 0, %s26
    %s20 = sphi 0, %s18
    %s21 = sphi 0, %s19
    %s22 = sphi 0, %s20
    %s23 = sphi 0, %s21
    %s35 = sphi 0, %s37
    %s38 = sphi 0, %s35
    %s39 = sphi 0, %s38
    %s55 = sphi 0, %s39
    %s65 = sphi 0, %s67
    %s68 = sphi 0, %s65
    %s69 = sphi 0, %s68
    %s85 = sphi 0, %s69
    %s95 = sphi 0, %s97
    %s98 = sphi 0, %s95
    %s99 = sphi 0, %s98
    %s115 = sphi 0, %s99
    %s119 = sphi 0, %s119
    %s121 = sphi 0, %s119
    %s122 = sphi 0, %s121
    %s136 = sphi 0, %s122
    %s140 = sphi 0, %s140
    %s142 = sphi 0, %s140
    %s143 = sphi 0, %s142
    %s157 = sphi 0, %s143
    %s165 = sphi 0, %s167
    %s168 = sphi 0, %s165
    %s169 = sphi 0, %s168
    %s185 = sphi 0, %s169
  $region4: #{model_forward.3} parent=0 // loop_header_branch
    %14 = sbr.rel (%p12) target = $region8
  $region5: #{model_forward.3} parent=0 // loop_body
    %s16 = ssub.s32 %s11, 1
    %s17 = ssub.s32 %s11, 2
    %s24 = sadd.s32 1, %s19
    %p25 = scmp.ge.s32.totalorder %s24, 2
    %s26 = scalar_select %p25, 0, %s24
    %s27 = sadd.s32 1, %s18
    %s28 = scalar_select %p25, %s27, %s18
    %p29 = scmp.ge.s32.totalorder %s28, 2
    %s30 = scalar_select %p29, 0, %s28
    %s31 = ssub.s32 %s18, %s30
    %s32 = ssub.s32 %s19, %s26
    %s33 = sor.u32 %s31, %s32
    %p34 = scmp.eq.s32.totalorder %s33, 0
    %s36 = sadd.s32 %s35, 1
    %s37 = scalar_select %p34, %s35, %s36
    %p40 = pneg %p34
    %p41 = scmp.eq.s32.totalorder %s11, 3
    %p42 = por %p40, %p41
    %p43 = scmp.ne.s32.totalorder %s35, %s38
    %p44 = scmp.eq.s32.totalorder %s11, 0
    %p45 = por %p43, %p44
    %p46 = scmp.ne.s32.totalorder %s35, %s38
    %p47 = scmp.eq.s32.totalorder %s16, 3
    %p48 = por %p46, %p47
    %p49 = scmp.ne.s32.totalorder %s38, %s39
    %p50 = scmp.eq.s32.totalorder %s16, 0
    %p51 = por %p49, %p50
    %p52 = scmp.ne.s32.totalorder %s38, %s39
    %p53 = scmp.eq.s32.totalorder %s17, 3
    %p54 = por %p52, %p53
    %p56 = scmp.ne.s32.totalorder %s39, %s55
    %p57 = scmp.eq.s32.totalorder %s17, 0
    %p58 = por %p56, %p57
    %s59 = sadd.s32 %s19, 1
    %s60 = sadd.s32 %s26, 1
    %s61 = ssub.s32 %s18, %s30
    %s62 = ssub.s32 %s59, %s60
    %s63 = sor.u32 %s61, %s62
    %p64 = scmp.eq.s32.totalorder %s63, 0
    %s66 = sadd.s32 %s65, 1
    %s67 = scalar_select %p64, %s65, %s66
    %p70 = pneg %p64
    %p71 = scmp.eq.s32.totalorder %s11, 3
    %p72 = por %p70, %p71
    %p73 = scmp.ne.s32.totalorder %s65, %s68
    %p74 = scmp.eq.s32.totalorder %s11, 0
    %p75 = por %p73, %p74
    %p76 = scmp.ne.s32.totalorder %s65, %s68
    %p77 = scmp.eq.s32.totalorder %s16, 3
    %p78 = por %p76, %p77
    %p79 = scmp.ne.s32.totalorder %s68, %s69
    %p80 = scmp.eq.s32.totalorder %s16, 0
    %p81 = por %p79, %p80
    %p82 = scmp.ne.s32.totalorder %s68, %s69
    %p83 = scmp.eq.s32.totalorder %s17, 3
    %p84 = por %p82, %p83
    %p86 = scmp.ne.s32.totalorder %s69, %s85
    %p87 = scmp.eq.s32.totalorder %s17, 0
    %p88 = por %p86, %p87
    %s89 = sadd.s32 %s19, 2
    %s90 = sadd.s32 %s26, 2
    %s91 = ssub.s32 %s18, %s30
    %s92 = ssub.s32 %s89, %s90
    %s93 = sor.u32 %s91, %s92
    %p94 = scmp.eq.s32.totalorder %s93, 0
    %s96 = sadd.s32 %s95, 1
    %s97 = scalar_select %p94, %s95, %s96
    %p100 = pneg %p94
    %p101 = scmp.eq.s32.totalorder %s11, 3
    %p102 = por %p100, %p101
    %p103 = scmp.ne.s32.totalorder %s95, %s98
    %p104 = scmp.eq.s32.totalorder %s11, 0
    %p105 = por %p103, %p104
    %p106 = scmp.ne.s32.totalorder %s95, %s98
    %p107 = scmp.eq.s32.totalorder %s16, 3
    %p108 = por %p106, %p107
    %p109 = scmp.ne.s32.totalorder %s98, %s99
    %p110 = scmp.eq.s32.totalorder %s16, 0
    %p111 = por %p109, %p110
    %p112 = scmp.ne.s32.totalorder %s98, %s99
    %p113 = scmp.eq.s32.totalorder %s17, 3
    %p114 = por %p112, %p113
    %p116 = scmp.ne.s32.totalorder %s99, %s115
    %p117 = scmp.eq.s32.totalorder %s17, 0
    %p118 = por %p116, %p117
    %s120 = sadd.s32 %s119, 1
    %p123 = scmp.eq.s32.totalorder %s11, 3
    %p124 = scmp.ne.s32.totalorder %s119, %s121
    %p125 = scmp.eq.s32.totalorder %s11, 0
    %p126 = por %p124, %p125
    %p127 = scmp.ne.s32.totalorder %s119, %s121
    %p128 = scmp.eq.s32.totalorder %s16, 3
    %p129 = por %p127, %p128
    %p130 = scmp.ne.s32.totalorder %s121, %s122
    %p131 = scmp.eq.s32.totalorder %s16, 0
    %p132 = por %p130, %p131
    %p133 = scmp.ne.s32.totalorder %s121, %s122
    %p134 = scmp.eq.s32.totalorder %s17, 3
    %p135 = por %p133, %p134
    %p137 = scmp.ne.s32.totalorder %s122, %s136
    %p138 = scmp.eq.s32.totalorder %s17, 0
    %p139 = por %p137, %p138
    %s141 = sadd.s32 %s140, 1
    %p144 = scmp.eq.s32.totalorder %s11, 3
    %p145 = scmp.ne.s32.totalorder %s140, %s142
    %p146 = scmp.eq.s32.totalorder %s11, 0
    %p147 = por %p145, %p146
    %p148 = scmp.ne.s32.totalorder %s140, %s142
    %p149 = scmp.eq.s32.totalorder %s16, 3
    %p150 = por %p148, %p149
    %p151 = scmp.ne.s32.totalorder %s142, %s143
    %p152 = scmp.eq.s32.totalorder %s16, 0
    %p153 = por %p151, %p152
    %p154 = scmp.ne.s32.totalorder %s142, %s143
    %p155 = scmp.eq.s32.totalorder %s17, 3
    %p156 = por %p154, %p155
    %p158 = scmp.ne.s32.totalorder %s143, %s157
    %p159 = scmp.eq.s32.totalorder %s17, 0
    %p160 = por %p158, %p159
    %s161 = ssub.s32 %s18, %s30
    %s162 = ssub.s32 %s19, %s26
    %s163 = sor.u32 %s161, %s162
    %p164 = scmp.eq.s32.totalorder %s163, 0
    %s166 = sadd.s32 %s165, 1
    %s167 = scalar_select %p164, %s165, %s166
    %p170 = pneg %p164
    %p171 = scmp.eq.s32.totalorder %s11, 3
    %p172 = por %p170, %p171
    %p173 = scmp.ne.s32.totalorder %s165, %s168
    %p174 = scmp.eq.s32.totalorder %s11, 0
    %p175 = por %p173, %p174
    %p176 = scmp.ne.s32.totalorder %s165, %s168
    %p177 = scmp.eq.s32.totalorder %s16, 3
    %p178 = por %p176, %p177
    %p179 = scmp.ne.s32.totalorder %s168, %s169
    %p180 = scmp.eq.s32.totalorder %s16, 0
    %p181 = por %p179, %p180
    %p182 = scmp.ne.s32.totalorder %s168, %s169
    %p183 = scmp.eq.s32.totalorder %s17, 3
    %p184 = por %p182, %p183
    %p186 = scmp.ne.s32.totalorder %s169, %s185
    %p187 = scmp.eq.s32.totalorder %s17, 0
    %p188 = por %p186, %p187
    %p189 = scmp.le.s32.totalorder 1, %s11
    %p190 = scmp.lt.s32.totalorder %s11, 5
    %p191 = pnand %p189, %p190
    %p192 = pneg %p191
    // Predicated region
    $region9: #{model_forward.3} parent=5 // pred_check
      _
    $region10: #{model_forward.3} parent=5 // pred_check_branch
      %194 = sbr.rel (%p191) target = $region12
    $region11: #{model_forward.3} parent=5 // pred_region
      %s195 = ssub.s32 %s11, 1
      // Predicated region
      $region13: #{model_forward.3} parent=11 // pred_check
        %p196 = pneg %p132
      $region14: #{model_forward.3} parent=11 // pred_check_branch
        %198 = sbr.rel (%p196) target = $region16
      $region15: #{model_forward.3} parent=11 // pred_region
        _
      $region16: #{model_forward.3} parent=11 // pred_fallthru
        _
      // Predicated region
      $region17: #{model_forward.3} parent=11 // pred_check
        %p199 = pneg %p153
      $region18: #{model_forward.3} parent=11 // pred_check_branch
        %201 = sbr.rel (%p199) target = $region20
      $region19: #{model_forward.3} parent=11 // pred_region
        _
      $region20: #{model_forward.3} parent=11 // pred_fallthru
        _
    $region12: #{model_forward.3} parent=5 // pred_fallthru
      _
    %p202 = scmp.lt.s32.totalorder %s11, 4
    // Predicated region
    $region21: #{model_forward.3} parent=5 // pred_check
      %p203 = pneg %p202
    $region22: #{model_forward.3} parent=5 // pred_check_branch
      %205 = sbr.rel (%p203) target = $region24
    $region23: #{model_forward.3} parent=5 // pred_region
      // Predicated region
      $region25: #{model_forward.3} parent=23 // pred_check
        %p206 = pneg %p45
      $region26: #{model_forward.3} parent=23 // pred_check_branch
        %208 = sbr.rel (%p206) target = $region28
      $region27: #{model_forward.3} parent=23 // pred_region
        %p209 = scmp.lt.s32.totalorder %s18, 1
        %s210 = scalar_select %p209, %s18, 1
        %p211 = scmp.lt.s32.totalorder %s19, 3
        %s212 = scalar_select %p211, %s19, 3
        %s213 = smul.addr %s210, 4
        %s214 = sadd.s32 %s212, %s213
        %s215 = smul.addr %s214, 2
        %s216 = scalar_lea.vmem %s0, %s215
      $region28: #{model_forward.3} parent=23 // pred_fallthru
        _
      // Predicated region
      $region29: #{model_forward.3} parent=23 // pred_check
        %p217 = pneg %p75
      $region30: #{model_forward.3} parent=23 // pred_check_branch
        %219 = sbr.rel (%p217) target = $region32
      $region31: #{model_forward.3} parent=23 // pred_region
        %s220 = sadd.s32 %s19, 1
        %p221 = scmp.lt.s32.totalorder %s18, 1
        %s222 = scalar_select %p221, %s18, 1
        %p223 = scmp.lt.s32.totalorder %s220, 3
        %s224 = scalar_select %p223, %s220, 3
        %s225 = smul.addr %s222, 4
        %s226 = sadd.s32 %s224, %s225
        %s227 = smul.addr %s226, 2
        %s228 = scalar_lea.vmem %s1, %s227
        %s229 = sadd.s32 %s19, 1
      $region32: #{model_forward.3} parent=23 // pred_fallthru
        _
      // Predicated region
      $region33: #{model_forward.3} parent=23 // pred_check
        %p230 = pneg %p105
      $region34: #{model_forward.3} parent=23 // pred_check_branch
        %232 = sbr.rel (%p230) target = $region36
      $region35: #{model_forward.3} parent=23 // pred_region
        %s233 = sadd.s32 %s19, 2
        %p234 = scmp.lt.s32.totalorder %s18, 1
        %s235 = scalar_select %p234, %s18, 1
        %p236 = scmp.lt.s32.totalorder %s233, 3
        %s237 = scalar_select %p236, %s233, 3
        %s238 = smul.addr %s235, 4
        %s239 = sadd.s32 %s237, %s238
        %s240 = smul.addr %s239, 2
        %s241 = scalar_lea.vmem %s2, %s240
        %s242 = sadd.s32 %s19, 2
      $region36: #{model_forward.3} parent=23 // pred_fallthru
        _
    $region24: #{model_forward.3} parent=5 // pred_fallthru
      _
    %p243 = scmp.le.s32.totalorder 1, %s11
    %p244 = scmp.lt.s32.totalorder %s11, 5
    %p245 = pnand %p243, %p244
    %p246 = pneg %p245
    // Predicated region
    $region37: #{model_forward.3} parent=5 // pred_check
      _
    $region38: #{model_forward.3} parent=5 // pred_check_branch
      %248 = sbr.rel (%p245) target = $region40
    $region39: #{model_forward.3} parent=5 // pred_region
      %s249 = ssub.s32 %s11, 1
      %p250 = scmp.lt.s32.totalorder %s20, 1
      %s251 = scalar_select %p250, %s20, 1
      %p252 = scmp.lt.s32.totalorder %s21, 3
      %s253 = scalar_select %p252, %s21, 3
      %s254 = smul.addr %s251, 4
      %s255 = sadd.s32 %s253, %s254
      %s256 = smul.addr %s255, 2
      %s257 = scalar_lea.vmem %s0, %s256
      %p258 = pneg %p51
      %p259 = pneg %p48
      %s260 = sadd.s32 %s21, 1
      %p261 = scmp.lt.s32.totalorder %s20, 1
      %s262 = scalar_select %p261, %s20, 1
      %p263 = scmp.lt.s32.totalorder %s260, 3
      %s264 = scalar_select %p263, %s260, 3
      %s265 = smul.addr %s262, 4
      %s266 = sadd.s32 %s264, %s265
      %s267 = smul.addr %s266, 2
      %s268 = scalar_lea.vmem %s1, %s267
      %p269 = pneg %p81
      %p270 = pneg %p78
      %s271 = sadd.s32 %s21, 2
      %p272 = scmp.lt.s32.totalorder %s20, 1
      %s273 = scalar_select %p272, %s20, 1
      %p274 = scmp.lt.s32.totalorder %s271, 3
      %s275 = scalar_select %p274, %s271, 3
      %s276 = smul.addr %s273, 4
      %s277 = sadd.s32 %s275, %s276
      %s278 = smul.addr %s277, 2
      %s279 = scalar_lea.vmem %s2, %s278
      %p280 = pneg %p111
      %p281 = pneg %p108
      %p282 = pneg %p132
      %p283 = pneg %p129
      %p284 = pneg %p153
      %p285 = pneg %p150
      %p286 = pneg %p181
      %p287 = pneg %p178
      %p288 = scmp.lt.s32.totalorder %s20, 1
      %s289 = scalar_select %p288, %s20, 1
      %p290 = scmp.lt.s32.totalorder %s21, 1
      %s291 = scalar_select %p290, %s21, 1
      %s292 = smul.addr %s289, 2
      %s293 = sadd.s32 %s291, %s292
      %s294 = smul.addr %s293, 2
      %s295 = scalar_lea.vmem %s5, %s294
      %p296 = scmp.lt.s32.totalorder %s20, 1
      %s297 = scalar_select %p296, %s20, 1
      %p298 = scmp.lt.s32.totalorder %s21, 3
      %s299 = scalar_select %p298, %s21, 3
      %s300 = smul.addr %s297, 4
      %s301 = sadd.s32 %s299, %s300
      %s302 = smul.addr %s301, 2
      %s303 = scalar_lea.vmem %s0, %s302
      %s304 = sadd.s32 %s21, 1
      %p305 = scmp.lt.s32.totalorder %s20, 1
      %s306 = scalar_select %p305, %s20, 1
      %p307 = scmp.lt.s32.totalorder %s304, 3
      %s308 = scalar_select %p307, %s304, 3
      %s309 = smul.addr %s306, 4
      %s310 = sadd.s32 %s308, %s309
      %s311 = smul.addr %s310, 2
      %s312 = scalar_lea.vmem %s1, %s311
      %s313 = sadd.s32 %s21, 1
      %s314 = sadd.s32 %s21, 2
      %p315 = scmp.lt.s32.totalorder %s20, 1
      %s316 = scalar_select %p315, %s20, 1
      %p317 = scmp.lt.s32.totalorder %s314, 3
      %s318 = scalar_select %p317, %s314, 3
      %s319 = smul.addr %s316, 4
      %s320 = sadd.s32 %s318, %s319
      %s321 = smul.addr %s320, 2
      %s322 = scalar_lea.vmem %s2, %s321
      %s323 = sadd.s32 %s21, 2
      %p324 = scmp.lt.s32.totalorder %s20, 1
      %s325 = scalar_select %p324, %s20, 1
      %p326 = scmp.lt.s32.totalorder %s21, 1
      %s327 = scalar_select %p326, %s21, 1
      %s328 = smul.addr %s325, 2
      %s329 = sadd.s32 %s327, %s328
      %s330 = smul.addr %s329, 2
      %s331 = scalar_lea.vmem %s5, %s330
      %v332 = vld [vmem:[%s303] sm:$0x3]
      %v333 = vld [vmem:[%s3] sm:$0xf]
      %v334 = vld [vmem:[%s3 + $0x4] sm:$0xf]
      %v335 = vld [vmem:[%s3 + $0x8] sm:$0xf]
      %v336 = vld [vmem:[%s3 + $0xc] sm:$0xf]
      %v337 = vld [vmem:[%s3 + $0x10] sm:$0xf]
      %v338 = vld [vmem:[%s3 + $0x14] sm:$0xf]
      %v339 = vld [vmem:[%s3 + $0x18] sm:$0xf]
      %v340 = vld [vmem:[%s3 + $0x1c] sm:$0xf]
      %v341 = vld [vmem:[%s3 + $0x20] sm:$0xf]
      %v342 = vld [vmem:[%s3 + $0x24] sm:$0xf]
      %v343 = vld [vmem:[%s3 + $0x28] sm:$0xf]
      %v344 = vld [vmem:[%s3 + $0x2c] sm:$0xf]
      %v345 = vld [vmem:[%s3 + $0x30] sm:$0xf]
      %v346 = vld [vmem:[%s3 + $0x34] sm:$0xf]
      %v347 = vld [vmem:[%s3 + $0x38] sm:$0xf]
      %v348 = vld [vmem:[%s3 + $0x3c] sm:$0xf]
      %s349 = scalar_lea.vmem %s3, 64
      %v350 = vld [vmem:[%s349] sm:$0xf]
      %v351 = vld [vmem:[%s349 + $0x4] sm:$0xf]
      %v352 = vld [vmem:[%s349 + $0x8] sm:$0xf]
      %v353 = vld [vmem:[%s349 + $0xc] sm:$0xf]
      %v354 = vld [vmem:[%s349 + $0x10] sm:$0xf]
      %v355 = vld [vmem:[%s349 + $0x14] sm:$0xf]
      %v356 = vld [vmem:[%s349 + $0x18] sm:$0xf]
      %v357 = vld [vmem:[%s349 + $0x1c] sm:$0xf]
      %v358 = vld [vmem:[%s349 + $0x20] sm:$0xf]
      %v359 = vld [vmem:[%s349 + $0x24] sm:$0xf]
      %v360 = vld [vmem:[%s349 + $0x28] sm:$0xf]
      %v361 = vld [vmem:[%s349 + $0x2c] sm:$0xf]
      %v362 = vld [vmem:[%s349 + $0x30] sm:$0xf]
      %v363 = vld [vmem:[%s349 + $0x34] sm:$0xf]
      %v364 = vld [vmem:[%s349 + $0x38] sm:$0xf]
      %v365 = vld [vmem:[%s349 + $0x3c] sm:$0xf]
      %367 = vst [vmem:[#allocation1] ss:$4 sm:$0xff] %v332
      %v368 = vld.sshfl [vmem:[#allocation1] sm:$0xff pattern:$0x73625140]
      %v369 = vshrl.u32 %v368, 16
      %v371 = vshll.u32 %v368, 16
      %v373 = vrot.slane %v371, 1
      %v374 = vor.u32 %v369, %v373
      %v392 = vunpack.c.l.b16 %v350
      %v393 = vunpack.c.l.b16 %v351
      %v394 = vunpack.c.l.b16 %v352
      %v395 = vunpack.c.l.b16 %v353
      %v396 = vunpack.c.l.b16 %v354
      %v397 = vunpack.c.l.b16 %v355
      %v398 = vunpack.c.l.b16 %v356
      %v399 = vunpack.c.l.b16 %v357
      %v400 = vunpack.c.l.b16 %v358
      %v401 = vunpack.c.l.b16 %v359
      %v402 = vunpack.c.l.b16 %v360
      %v403 = vunpack.c.l.b16 %v361
      %v404 = vunpack.c.l.b16 %v362
      %v405 = vunpack.c.l.b16 %v363
      %v406 = vunpack.c.l.b16 %v364
      %v407 = vunpack.c.l.b16 %v365
      %v408 = vpack.c.b16 %v393, %v392
      %v409 = vpack.c.b16 %v395, %v394
      %v410 = vpack.c.b16 %v397, %v396
      %v411 = vpack.c.b16 %v399, %v398
      %v412 = vpack.c.b16 %v401, %v400
      %v413 = vpack.c.b16 %v403, %v402
      %v414 = vpack.c.b16 %v405, %v404
      %v415 = vpack.c.b16 %v407, %v406
      %424 = vmatpush.bf16.msra.mxu0 %v415
      %425 = vmatpush.bf16.msra.mxu0 %v414
      %426 = vmatpush.bf16.msra.mxu0 %v413
      %427 = vmatpush.bf16.msra.mxu0 %v412
      %428 = vmatpush.bf16.msra.mxu0 %v411
      %429 = vmatpush.bf16.msra.mxu0 %v410
      %430 = vmatpush.bf16.msra.mxu0 %v409
      %431 = vmatpush.bf16.msra.mxu0 %v408
      %432 = vmatmul.bf16.gmra.mxu0 %v374
      %v433 = vpop.f32.mrf.mxu0
      %v434 = vadd.f32 0.0, %v433
      %v435 = vpop.f32.mrf.mxu0
      %436 = vdwg.mxu0
      %v453 = vunpack.c.l.b16 %v333
      %v454 = vunpack.c.l.b16 %v334
      %v455 = vunpack.c.l.b16 %v335
      %v456 = vunpack.c.l.b16 %v336
      %v457 = vunpack.c.l.b16 %v337
      %v458 = vunpack.c.l.b16 %v338
      %v459 = vunpack.c.l.b16 %v339
      %v460 = vunpack.c.l.b16 %v340
      %v461 = vunpack.c.l.b16 %v341
      %v462 = vunpack.c.l.b16 %v342
      %v463 = vunpack.c.l.b16 %v343
      %v464 = vunpack.c.l.b16 %v344
      %v465 = vunpack.c.l.b16 %v345
      %v466 = vunpack.c.l.b16 %v346
      %v467 = vunpack.c.l.b16 %v347
      %v468 = vunpack.c.l.b16 %v348
      %v469 = vpack.c.b16 %v454, %v453
      %v470 = vpack.c.b16 %v456, %v455
      %v471 = vpack.c.b16 %v458, %v457
      %v472 = vpack.c.b16 %v460, %v459
      %v473 = vpack.c.b16 %v462, %v461
      %v474 = vpack.c.b16 %v464, %v463
      %v475 = vpack.c.b16 %v466, %v465
      %v476 = vpack.c.b16 %v468, %v467
      %485 = vmatpush.bf16.msra.mxu0 %v476
      %486 = vmatpush.bf16.msra.mxu0 %v475
      %487 = vmatpush.bf16.msra.mxu0 %v474
      %488 = vmatpush.bf16.msra.mxu0 %v473
      %489 = vmatpush.bf16.msra.mxu0 %v472
      %490 = vmatpush.bf16.msra.mxu0 %v471
      %491 = vmatpush.bf16.msra.mxu0 %v470
      %492 = vmatpush.bf16.msra.mxu0 %v469
      %493 = vmatmul.bf16.gmra.mxu0 %v332
      %v494 = vpop.f32.mrf.mxu0
      %v495 = vadd.f32 %v434, %v494
      %v496 = vpop.f32.mrf.mxu0
      %497 = vdwg.mxu0
      %s498 = scalar_lea.vmem %s3, 128
      %v499 = vld [vmem:[%s498] sm:$0xf]
      %v500 = vld [vmem:[%s498 + $0x4] sm:$0xf]
      %v501 = vld [vmem:[%s498 + $0x8] sm:$0xf]
      %v502 = vld [vmem:[%s498 + $0xc] sm:$0xf]
      %v503 = vld [vmem:[%s498 + $0x10] sm:$0xf]
      %v504 = vld [vmem:[%s498 + $0x14] sm:$0xf]
      %v505 = vld [vmem:[%s498 + $0x18] sm:$0xf]
      %v506 = vld [vmem:[%s498 + $0x1c] sm:$0xf]
      %v507 = vld [vmem:[%s498 + $0x20] sm:$0xf]
      %v508 = vld [vmem:[%s498 + $0x24] sm:$0xf]
      %v509 = vld [vmem:[%s498 + $0x28] sm:$0xf]
      %v510 = vld [vmem:[%s498 + $0x2c] sm:$0xf]
      %v511 = vld [vmem:[%s498 + $0x30] sm:$0xf]
      %v512 = vld [vmem:[%s498 + $0x34] sm:$0xf]
      %v513 = vld [vmem:[%s498 + $0x38] sm:$0xf]
      %v514 = vld [vmem:[%s498 + $0x3c] sm:$0xf]
      %515 = vst [vmem:[#allocation1] ss:$4 sm:$0xff] %v332
      %v516 = vld.sshfl [vmem:[#allocation1] sm:$0xff pattern:$0x73625140]
      %v518 = vrot.slane %v516, 1
      %v536 = vunpack.c.l.b16 %v499
      %v537 = vunpack.c.l.b16 %v500
      %v538 = vunpack.c.l.b16 %v501
      %v539 = vunpack.c.l.b16 %v502
      %v540 = vunpack.c.l.b16 %v503
      %v541 = vunpack.c.l.b16 %v504
      %v542 = vunpack.c.l.b16 %v505
      %v543 = vunpack.c.l.b16 %v506
      %v544 = vunpack.c.l.b16 %v507
      %v545 = vunpack.c.l.b16 %v508
      %v546 = vunpack.c.l.b16 %v509
      %v547 = vunpack.c.l.b16 %v510
      %v548 = vunpack.c.l.b16 %v511
      %v549 = vunpack.c.l.b16 %v512
      %v550 = vunpack.c.l.b16 %v513
      %v551 = vunpack.c.l.b16 %v514
      %v552 = vpack.c.b16 %v537, %v536
      %v553 = vpack.c.b16 %v539, %v538
      %v554 = vpack.c.b16 %v541, %v540
      %v555 = vpack.c.b16 %v543, %v542
      %v556 = vpack.c.b16 %v545, %v544
      %v557 = vpack.c.b16 %v547, %v546
      %v558 = vpack.c.b16 %v549, %v548
      %v559 = vpack.c.b16 %v551, %v550
      %568 = vmatpush.bf16.msra.mxu0 %v559
      %569 = vmatpush.bf16.msra.mxu0 %v558
      %570 = vmatpush.bf16.msra.mxu0 %v557
      %571 = vmatpush.bf16.msra.mxu0 %v556
      %572 = vmatpush.bf16.msra.mxu0 %v555
      %573 = vmatpush.bf16.msra.mxu0 %v554
      %574 = vmatpush.bf16.msra.mxu0 %v553
      %575 = vmatpush.bf16.msra.mxu0 %v552
      %576 = vmatmul.bf16.gmra.mxu0 %v518
      %v577 = vpop.f32.mrf.mxu0
      %v578 = vadd.f32 0.0, %v577
      %v579 = vpop.f32.mrf.mxu0
      %580 = vdwg.mxu0
      %v581 = vadd.f32 %v495, %v578
      %v582 = vld [vmem:[%s312] sm:$0x3]
      %s583 = scalar_lea.vmem %s3, 192
      %v584 = vld [vmem:[%s583] sm:$0xf]
      %v585 = vld [vmem:[%s583 + $0x4] sm:$0xf]
      %v586 = vld [vmem:[%s583 + $0x8] sm:$0xf]
      %v587 = vld [vmem:[%s583 + $0xc] sm:$0xf]
      %v588 = vld [vmem:[%s583 + $0x10] sm:$0xf]
      %v589 = vld [vmem:[%s583 + $0x14] sm:$0xf]
      %v590 = vld [vmem:[%s583 + $0x18] sm:$0xf]
      %v591 = vld [vmem:[%s583 + $0x1c] sm:$0xf]
      %v592 = vld [vmem:[%s583 + $0x20] sm:$0xf]
      %v593 = vld [vmem:[%s583 + $0x24] sm:$0xf]
      %v594 = vld [vmem:[%s583 + $0x28] sm:$0xf]
      %v595 = vld [vmem:[%s583 + $0x2c] sm:$0xf]
      %v596 = vld [vmem:[%s583 + $0x30] sm:$0xf]
      %v597 = vld [vmem:[%s583 + $0x34] sm:$0xf]
      %v598 = vld [vmem:[%s583 + $0x38] sm:$0xf]
      %v599 = vld [vmem:[%s583 + $0x3c] sm:$0xf]
      %v616 = vunpack.c.l.b16 %v584
      %v617 = vunpack.c.l.b16 %v585
      %v618 = vunpack.c.l.b16 %v586
      %v619 = vunpack.c.l.b16 %v587
      %v620 = vunpack.c.l.b16 %v588
      %v621 = vunpack.c.l.b16 %v589
      %v622 = vunpack.c.l.b16 %v590
      %v623 = vunpack.c.l.b16 %v591
      %v624 = vunpack.c.l.b16 %v592
      %v625 = vunpack.c.l.b16 %v593
      %v626 = vunpack.c.l.b16 %v594
      %v627 = vunpack.c.l.b16 %v595
      %v628 = vunpack.c.l.b16 %v596
      %v629 = vunpack.c.l.b16 %v597
      %v630 = vunpack.c.l.b16 %v598
      %v631 = vunpack.c.l.b16 %v599
      %v632 = vpack.c.b16 %v617, %v616
      %v633 = vpack.c.b16 %v619, %v618
      %v634 = vpack.c.b16 %v621, %v620
      %v635 = vpack.c.b16 %v623, %v622
      %v636 = vpack.c.b16 %v625, %v624
      %v637 = vpack.c.b16 %v627, %v626
      %v638 = vpack.c.b16 %v629, %v628
      %v639 = vpack.c.b16 %v631, %v630
      %648 = vmatpush.bf16.msra.mxu0 %v639
      %649 = vmatpush.bf16.msra.mxu0 %v638
      %650 = vmatpush.bf16.msra.mxu0 %v637
      %651 = vmatpush.bf16.msra.mxu0 %v636
      %652 = vmatpush.bf16.msra.mxu0 %v635
      %653 = vmatpush.bf16.msra.mxu0 %v634
      %654 = vmatpush.bf16.msra.mxu0 %v633
      %655 = vmatpush.bf16.msra.mxu0 %v632
      %656 = vmatmul.bf16.gmra.mxu0 %v582
      %v657 = vpop.f32.mrf.mxu0
      %v658 = vadd.f32 0.0, %v657
      %v659 = vpop.f32.mrf.mxu0
      %660 = vdwg.mxu0
      %v661 = vadd.f32 %v581, %v658
      %s662 = scalar_lea.vmem %s3, 256
      %v663 = vld [vmem:[%s662] sm:$0xf]
      %v664 = vld [vmem:[%s662 + $0x4] sm:$0xf]
      %v665 = vld [vmem:[%s662 + $0x8] sm:$0xf]
      %v666 = vld [vmem:[%s662 + $0xc] sm:$0xf]
      %v667 = vld [vmem:[%s662 + $0x10] sm:$0xf]
      %v668 = vld [vmem:[%s662 + $0x14] sm:$0xf]
      %v669 = vld [vmem:[%s662 + $0x18] sm:$0xf]
      %v670 = vld [vmem:[%s662 + $0x1c] sm:$0xf]
      %v671 = vld [vmem:[%s662 + $0x20] sm:$0xf]
      %v672 = vld [vmem:[%s662 + $0x24] sm:$0xf]
      %v673 = vld [vmem:[%s662 + $0x28] sm:$0xf]
      %v674 = vld [vmem:[%s662 + $0x2c] sm:$0xf]
      %v675 = vld [vmem:[%s662 + $0x30] sm:$0xf]
      %v676 = vld [vmem:[%s662 + $0x34] sm:$0xf]
      %v677 = vld [vmem:[%s662 + $0x38] sm:$0xf]
      %v678 = vld [vmem:[%s662 + $0x3c] sm:$0xf]
      %680 = vst [vmem:[#allocation1] ss:$4 sm:$0xff] %v582
      %v681 = vld.sshfl [vmem:[#allocation1] sm:$0xff pattern:$0x73625140]
      %v682 = vshrl.u32 %v681, 16
      %v684 = vshll.u32 %v681, 16
      %v686 = vrot.slane %v684, 1
      %v687 = vor.u32 %v682, %v686
      %v705 = vunpack.c.l.b16 %v663
      %v706 = vunpack.c.l.b16 %v664
      %v707 = vunpack.c.l.b16 %v665
      %v708 = vunpack.c.l.b16 %v666
      %v709 = vunpack.c.l.b16 %v667
      %v710 = vunpack.c.l.b16 %v668
      %v711 = vunpack.c.l.b16 %v669
      %v712 = vunpack.c.l.b16 %v670
      %v713 = vunpack.c.l.b16 %v671
      %v714 = vunpack.c.l.b16 %v672
      %v715 = vunpack.c.l.b16 %v673
      %v716 = vunpack.c.l.b16 %v674
      %v717 = vunpack.c.l.b16 %v675
      %v718 = vunpack.c.l.b16 %v676
      %v719 = vunpack.c.l.b16 %v677
      %v720 = vunpack.c.l.b16 %v678
      %v721 = vpack.c.b16 %v706, %v705
      %v722 = vpack.c.b16 %v708, %v707
      %v723 = vpack.c.b16 %v710, %v709
      %v724 = vpack.c.b16 %v712, %v711
      %v725 = vpack.c.b16 %v714, %v713
      %v726 = vpack.c.b16 %v716, %v715
      %v727 = vpack.c.b16 %v718, %v717
      %v728 = vpack.c.b16 %v720, %v719
      %737 = vmatpush.bf16.msra.mxu0 %v728
      %738 = vmatpush.bf16.msra.mxu0 %v727
      %739 = vmatpush.bf16.msra.mxu0 %v726
      %740 = vmatpush.bf16.msra.mxu0 %v725
      %741 = vmatpush.bf16.msra.mxu0 %v724
      %742 = vmatpush.bf16.msra.mxu0 %v723
      %743 = vmatpush.bf16.msra.mxu0 %v722
      %744 = vmatpush.bf16.msra.mxu0 %v721
      %745 = vmatmul.bf16.gmra.mxu0 %v687
      %v746 = vpop.f32.mrf.mxu0
      %v747 = vadd.f32 0.0, %v746
      %v748 = vpop.f32.mrf.mxu0
      %749 = vdwg.mxu0
      %v750 = vadd.f32 %v661, %v747
      %s751 = scalar_lea.vmem %s3, 320
      %v752 = vld [vmem:[%s751] sm:$0xf]
      %v753 = vld [vmem:[%s751 + $0x4] sm:$0xf]
      %v754 = vld [vmem:[%s751 + $0x8] sm:$0xf]
      %v755 = vld [vmem:[%s751 + $0xc] sm:$0xf]
      %v756 = vld [vmem:[%s751 + $0x10] sm:$0xf]
      %v757 = vld [vmem:[%s751 + $0x14] sm:$0xf]
      %v758 = vld [vmem:[%s751 + $0x18] sm:$0xf]
      %v759 = vld [vmem:[%s751 + $0x1c] sm:$0xf]
      %v760 = vld [vmem:[%s751 + $0x20] sm:$0xf]
      %v761 = vld [vmem:[%s751 + $0x24] sm:$0xf]
      %v762 = vld [vmem:[%s751 + $0x28] sm:$0xf]
      %v763 = vld [vmem:[%s751 + $0x2c] sm:$0xf]
      %v764 = vld [vmem:[%s751 + $0x30] sm:$0xf]
      %v765 = vld [vmem:[%s751 + $0x34] sm:$0xf]
      %v766 = vld [vmem:[%s751 + $0x38] sm:$0xf]
      %v767 = vld [vmem:[%s751 + $0x3c] sm:$0xf]
      %768 = vst [vmem:[#allocation1] ss:$4 sm:$0xff] %v582
      %v769 = vld.sshfl [vmem:[#allocation1] sm:$0xff pattern:$0x73625140]
      %v771 = vrot.slane %v769, 1
      %v789 = vunpack.c.l.b16 %v752
      %v790 = vunpack.c.l.b16 %v753
      %v791 = vunpack.c.l.b16 %v754
      %v792 = vunpack.c.l.b16 %v755
      %v793 = vunpack.c.l.b16 %v756
      %v794 = vunpack.c.l.b16 %v757
      %v795 = vunpack.c.l.b16 %v758
      %v796 = vunpack.c.l.b16 %v759
      %v797 = vunpack.c.l.b16 %v760
      %v798 = vunpack.c.l.b16 %v761
      %v799 = vunpack.c.l.b16 %v762
      %v800 = vunpack.c.l.b16 %v763
      %v801 = vunpack.c.l.b16 %v764
      %v802 = vunpack.c.l.b16 %v765
      %v803 = vunpack.c.l.b16 %v766
      %v804 = vunpack.c.l.b16 %v767
      %v805 = vpack.c.b16 %v790, %v789
      %v806 = vpack.c.b16 %v792, %v791
      %v807 = vpack.c.b16 %v794, %v793
      %v808 = vpack.c.b16 %v796, %v795
      %v809 = vpack.c.b16 %v798, %v797
      %v810 = vpack.c.b16 %v800, %v799
      %v811 = vpack.c.b16 %v802, %v801
      %v812 = vpack.c.b16 %v804, %v803
      %821 = vmatpush.bf16.msra.mxu0 %v812
      %822 = vmatpush.bf16.msra.mxu0 %v811
      %823 = vmatpush.bf16.msra.mxu0 %v810
      %824 = vmatpush.bf16.msra.mxu0 %v809
      %825 = vmatpush.bf16.msra.mxu0 %v808
      %826 = vmatpush.bf16.msra.mxu0 %v807
      %827 = vmatpush.bf16.msra.mxu0 %v806
      %828 = vmatpush.bf16.msra.mxu0 %v805
      %829 = vmatmul.bf16.gmra.mxu0 %v771
      %v830 = vpop.f32.mrf.mxu0
      %v831 = vadd.f32 0.0, %v830
      %v832 = vpop.f32.mrf.mxu0
      %833 = vdwg.mxu0
      %v834 = vadd.f32 %v750, %v831
      %v835 = vld [vmem:[%s322] sm:$0x3]
      %s836 = scalar_lea.vmem %s3, 384
      %v837 = vld [vmem:[%s836] sm:$0xf]
      %v838 = vld [vmem:[%s836 + $0x4] sm:$0xf]
      %v839 = vld [vmem:[%s836 + $0x8] sm:$0xf]
      %v840 = vld [vmem:[%s836 + $0xc] sm:$0xf]
      %v841 = vld [vmem:[%s836 + $0x10] sm:$0xf]
      %v842 = vld [vmem:[%s836 + $0x14] sm:$0xf]
      %v843 = vld [vmem:[%s836 + $0x18] sm:$0xf]
      %v844 = vld [vmem:[%s836 + $0x1c] sm:$0xf]
      %v845 = vld [vmem:[%s836 + $0x20] sm:$0xf]
      %v846 = vld [vmem:[%s836 + $0x24] sm:$0xf]
      %v847 = vld [vmem:[%s836 + $0x28] sm:$0xf]
      %v848 = vld [vmem:[%s836 + $0x2c] sm:$0xf]
      %v849 = vld [vmem:[%s836 + $0x30] sm:$0xf]
      %v850 = vld [vmem:[%s836 + $0x34] sm:$0xf]
      %v851 = vld [vmem:[%s836 + $0x38] sm:$0xf]
      %v852 = vld [vmem:[%s836 + $0x3c] sm:$0xf]
      %v869 = vunpack.c.l.b16 %v837
      %v870 = vunpack.c.l.b16 %v838
      %v871 = vunpack.c.l.b16 %v839
      %v872 = vunpack.c.l.b16 %v840
      %v873 = vunpack.c.l.b16 %v841
      %v874 = vunpack.c.l.b16 %v842
      %v875 = vunpack.c.l.b16 %v843
      %v876 = vunpack.c.l.b16 %v844
      %v877 = vunpack.c.l.b16 %v845
      %v878 = vunpack.c.l.b16 %v846
      %v879 = vunpack.c.l.b16 %v847
      %v880 = vunpack.c.l.b16 %v848
      %v881 = vunpack.c.l.b16 %v849
      %v882 = vunpack.c.l.b16 %v850
      %v883 = vunpack.c.l.b16 %v851
      %v884 = vunpack.c.l.b16 %v852
      %v885 = vpack.c.b16 %v870, %v869
      %v886 = vpack.c.b16 %v872, %v871
      %v887 = vpack.c.b16 %v874, %v873
      %v888 = vpack.c.b16 %v876, %v875
      %v889 = vpack.c.b16 %v878, %v877
      %v890 = vpack.c.b16 %v880, %v879
      %v891 = vpack.c.b16 %v882, %v881
      %v892 = vpack.c.b16 %v884, %v883
      %901 = vmatpush.bf16.msra.mxu0 %v892
      %902 = vmatpush.bf16.msra.mxu0 %v891
      %903 = vmatpush.bf16.msra.mxu0 %v890
      %904 = vmatpush.bf16.msra.mxu0 %v889
      %905 = vmatpush.bf16.msra.mxu0 %v888
      %906 = vmatpush.bf16.msra.mxu0 %v887
      %907 = vmatpush.bf16.msra.mxu0 %v886
      %908 = vmatpush.bf16.msra.mxu0 %v885
      %909 = vmatmul.bf16.gmra.mxu0 %v835
      %v910 = vpop.f32.mrf.mxu0
      %v911 = vadd.f32 0.0, %v910
      %v912 = vpop.f32.mrf.mxu0
      %913 = vdwg.mxu0
      %v914 = vadd.f32 %v834, %v911
      %s915 = scalar_lea.vmem %s3, 448
      %v916 = vld [vmem:[%s915] sm:$0xf]
      %v917 = vld [vmem:[%s915 + $0x4] sm:$0xf]
      %v918 = vld [vmem:[%s915 + $0x8] sm:$0xf]
      %v919 = vld [vmem:[%s915 + $0xc] sm:$0xf]
      %v920 = vld [vmem:[%s915 + $0x10] sm:$0xf]
      %v921 = vld [vmem:[%s915 + $0x14] sm:$0xf]
      %v922 = vld [vmem:[%s915 + $0x18] sm:$0xf]
      %v923 = vld [vmem:[%s915 + $0x1c] sm:$0xf]
      %v924 = vld [vmem:[%s915 + $0x20] sm:$0xf]
      %v925 = vld [vmem:[%s915 + $0x24] sm:$0xf]
      %v926 = vld [vmem:[%s915 + $0x28] sm:$0xf]
      %v927 = vld [vmem:[%s915 + $0x2c] sm:$0xf]
      %v928 = vld [vmem:[%s915 + $0x30] sm:$0xf]
      %v929 = vld [vmem:[%s915 + $0x34] sm:$0xf]
      %v930 = vld [vmem:[%s915 + $0x38] sm:$0xf]
      %v931 = vld [vmem:[%s915 + $0x3c] sm:$0xf]
      %933 = vst [vmem:[#allocation1] ss:$4 sm:$0xff] %v835
      %v934 = vld.sshfl [vmem:[#allocation1] sm:$0xff pattern:$0x73625140]
      %v935 = vshrl.u32 %v934, 16
      %v937 = vshll.u32 %v934, 16
      %v939 = vrot.slane %v937, 1
      %v940 = vor.u32 %v935, %v939
      %v958 = vunpack.c.l.b16 %v916
      %v959 = vunpack.c.l.b16 %v917
      %v960 = vunpack.c.l.b16 %v918
      %v961 = vunpack.c.l.b16 %v919
      %v962 = vunpack.c.l.b16 %v920
      %v963 = vunpack.c.l.b16 %v921
      %v964 = vunpack.c.l.b16 %v922
      %v965 = vunpack.c.l.b16 %v923
      %v966 = vunpack.c.l.b16 %v924
      %v967 = vunpack.c.l.b16 %v925
      %v968 = vunpack.c.l.b16 %v926
      %v969 = vunpack.c.l.b16 %v927
      %v970 = vunpack.c.l.b16 %v928
      %v971 = vunpack.c.l.b16 %v929
      %v972 = vunpack.c.l.b16 %v930
      %v973 = vunpack.c.l.b16 %v931
      %v974 = vpack.c.b16 %v959, %v958
      %v975 = vpack.c.b16 %v961, %v960
      %v976 = vpack.c.b16 %v963, %v962
      %v977 = vpack.c.b16 %v965, %v964
      %v978 = vpack.c.b16 %v967, %v966
      %v979 = vpack.c.b16 %v969, %v968
      %v980 = vpack.c.b16 %v971, %v970
      %v981 = vpack.c.b16 %v973, %v972
      %990 = vmatpush.bf16.msra.mxu0 %v981
      %991 = vmatpush.bf16.msra.mxu0 %v980
      %992 = vmatpush.bf16.msra.mxu0 %v979
      %993 = vmatpush.bf16.msra.mxu0 %v978
      %994 = vmatpush.bf16.msra.mxu0 %v977
      %995 = vmatpush.bf16.msra.mxu0 %v976
      %996 = vmatpush.bf16.msra.mxu0 %v975
      %997 = vmatpush.bf16.msra.mxu0 %v974
      %998 = vmatmul.bf16.gmra.mxu0 %v940
      %v999 = vpop.f32.mrf.mxu0
      %v1000 = vadd.f32 0.0, %v999
      %v1001 = vpop.f32.mrf.mxu0
      %1002 = vdwg.mxu0
      %v1003 = vadd.f32 %v914, %v1000
      %s1004 = scalar_lea.vmem %s3, 512
      %v1005 = vld [vmem:[%s1004] sm:$0xf]
      %v1006 = vld [vmem:[%s1004 + $0x4] sm:$0xf]
      %v1007 = vld [vmem:[%s1004 + $0x8] sm:$0xf]
      %v1008 = vld [vmem:[%s1004 + $0xc] sm:$0xf]
      %v1009 = vld [vmem:[%s1004 + $0x10] sm:$0xf]
      %v1010 = vld [vmem:[%s1004 + $0x14] sm:$0xf]
      %v1011 = vld [vmem:[%s1004 + $0x18] sm:$0xf]
      %v1012 = vld [vmem:[%s1004 + $0x1c] sm:$0xf]
      %v1013 = vld [vmem:[%s1004 + $0x20] sm:$0xf]
      %v1014 = vld [vmem:[%s1004 + $0x24] sm:$0xf]
      %v1015 = vld [vmem:[%s1004 + $0x28] sm:$0xf]
      %v1016 = vld [vmem:[%s1004 + $0x2c] sm:$0xf]
      %v1017 = vld [vmem:[%s1004 + $0x30] sm:$0xf]
      %v1018 = vld [vmem:[%s1004 + $0x34] sm:$0xf]
      %v1019 = vld [vmem:[%s1004 + $0x38] sm:$0xf]
      %v1020 = vld [vmem:[%s1004 + $0x3c] sm:$0xf]
      %1021 = vst [vmem:[#allocation1] ss:$4 sm:$0xff] %v835
      %v1022 = vld.sshfl [vmem:[#allocation1] sm:$0xff pattern:$0x73625140]
      %v1024 = vrot.slane %v1022, 1
      %v1042 = vunpack.c.l.b16 %v1005
      %v1043 = vunpack.c.l.b16 %v1006
      %v1044 = vunpack.c.l.b16 %v1007
      %v1045 = vunpack.c.l.b16 %v1008
      %v1046 = vunpack.c.l.b16 %v1009
      %v1047 = vunpack.c.l.b16 %v1010
      %v1048 = vunpack.c.l.b16 %v1011
      %v1049 = vunpack.c.l.b16 %v1012
      %v1050 = vunpack.c.l.b16 %v1013
      %v1051 = vunpack.c.l.b16 %v1014
      %v1052 = vunpack.c.l.b16 %v1015
      %v1053 = vunpack.c.l.b16 %v1016
      %v1054 = vunpack.c.l.b16 %v1017
      %v1055 = vunpack.c.l.b16 %v1018
      %v1056 = vunpack.c.l.b16 %v1019
      %v1057 = vunpack.c.l.b16 %v1020
      %v1058 = vpack.c.b16 %v1043, %v1042
      %v1059 = vpack.c.b16 %v1045, %v1044
      %v1060 = vpack.c.b16 %v1047, %v1046
      %v1061 = vpack.c.b16 %v1049, %v1048
      %v1062 = vpack.c.b16 %v1051, %v1050
      %v1063 = vpack.c.b16 %v1053, %v1052
      %v1064 = vpack.c.b16 %v1055, %v1054
      %v1065 = vpack.c.b16 %v1057, %v1056
      %1074 = vmatpush.bf16.msra.mxu0 %v1065
      %1075 = vmatpush.bf16.msra.mxu0 %v1064
      %1076 = vmatpush.bf16.msra.mxu0 %v1063
      %1077 = vmatpush.bf16.msra.mxu0 %v1062
      %1078 = vmatpush.bf16.msra.mxu0 %v1061
      %1079 = vmatpush.bf16.msra.mxu0 %v1060
      %1080 = vmatpush.bf16.msra.mxu0 %v1059
      %1081 = vmatpush.bf16.msra.mxu0 %v1058
      %1082 = vmatmul.bf16.gmra.mxu0 %v1024
      %v1083 = vpop.f32.mrf.mxu0
      %v1084 = vadd.f32 0.0, %v1083
      %v1085 = vpop.f32.mrf.mxu0
      %1086 = vdwg.mxu0
      %v1087 = vadd.f32 %v1003, %v1084
      %v1088 = vld [vmem:[%s4] sm:$0x1]
      %v1090 = vperm.slane %v1088, 0
      %v1092 = vadd.f32 %v1087, %v1090
      %vm1093 = vcmask 58368
      %1094 = vst.msk [vmem:[%s331] sm:$0x3] %vm1093, %v1092
      %p1095 = scmp.lt.s32.totalorder %s20, 1
      %s1096 = scalar_select %p1095, %s20, 1
      %p1097 = scmp.lt.s32.totalorder %s21, 1
      %s1098 = scalar_select %p1097, %s21, 1
      %s1099 = smul.addr %s1096, 2
      %s1100 = sadd.s32 %s1098, %s1099
      %s1101 = smul.addr %s1100, 2
      %s1102 = scalar_lea.vmem %s5, %s1101
      // Predicated region
      $region41: #{model_forward.3} parent=39 // pred_check
        %p1103 = pneg %p178
      $region42: #{model_forward.3} parent=39 // pred_check_branch
        %1105 = sbr.rel (%p1103) target = $region44
      $region43: #{model_forward.3} parent=39 // pred_region
        _
      $region44: #{model_forward.3} parent=39 // pred_fallthru
        _
    $region40: #{model_forward.3} parent=5 // pred_fallthru
      _
    %p1106 = scmp.le.s32.totalorder 2, %s11
    // Predicated region
    $region45: #{model_forward.3} parent=5 // pred_check
      %p1107 = pneg %p1106
    $region46: #{model_forward.3} parent=5 // pred_check_branch
      %1109 = sbr.rel (%p1107) target = $region48
    $region47: #{model_forward.3} parent=5 // pred_region
      %s1110 = ssub.s32 %s11, 2
      // Predicated region
      $region49: #{model_forward.3} parent=47 // pred_check
        %p1111 = pneg %p184
      $region50: #{model_forward.3} parent=47 // pred_check_branch
        %1113 = sbr.rel (%p1111) target = $region52
      $region51: #{model_forward.3} parent=47 // pred_region
        %p1114 = scmp.lt.s32.totalorder %s22, 1
        %s1115 = scalar_select %p1114, %s22, 1
        %p1116 = scmp.lt.s32.totalorder %s23, 1
        %s1117 = scalar_select %p1116, %s23, 1
        %s1118 = smul.addr %s1115, 2
        %s1119 = sadd.s32 %s1117, %s1118
        %s1120 = smul.addr %s1119, 2
        %s1121 = scalar_lea.vmem %s5, %s1120
      $region52: #{model_forward.3} parent=47 // pred_fallthru
        _
    $region48: #{model_forward.3} parent=5 // pred_fallthru
      _
  $region6: #{model_forward.3} parent=0 // loop_footer
    %s15 = sadd.s32 1, %s11
  $region7: #{model_forward.3} parent=0 // loop_footer_branch
    %10 = sbr.rel target = $region3
  $region8: #{model_forward.3} parent=0 // loop_exit
    _

// kernel: model_forward.2
$region0: #{model_forward.2}
  #allocation0 [shape = 'u32[]', space=smem, size = 0x4, offset = 0x4, fixed_abs, tag = 'smem constant byte address 0x4 - core index']
  #allocation1 [shape = 'u32[72,128]{1,0:T(1,128)}', space=vmem, size = 0x9000, scoped, tag = 'internal scratch']
  %s0 = inlined_call_operand.vmem [shape: f32[4,32,2,32], index: 0, kind: input, shape index: {}]
  %s1 = inlined_call_operand.vmem [shape: bf16[32,32,128], index: 1, kind: input, shape index: {}]
  %s2 = inlined_call_operand.vmem [shape: f32[1,128], index: 2, kind: input, shape index: {}]
  %s3 = inlined_call_operand.vmem [shape: bf16[4,2,128], index: 3, kind: output, shape index: {}]
  %s4 = sld [smem:[#allocation0]]
  $region45: #{model_forward.2} parent=0
    _
  %s6 = ssub.s32 1, %s4
  %s7 = scalar_select 0, %s6, %s4
  loop: start=0, step=1, limit=6
  $region2: #{model_forward.2} parent=0 // loop_pre_header
    _
  $region3: #{model_forward.2} parent=0 // loop_header
    %s9 = sphi 0, %s13
    %p10 = scmp.ge.s32.totalorder %s9, 6
    %s19 = sphi 0, %s21
    %s22 = sphi 0, %s19
    %s23 = sphi 0, %s22
    %s39 = sphi 0, %s23
    %s43 = sphi 0, %s43
    %s45 = sphi 0, %s43
    %s46 = sphi 0, %s45
    %s60 = sphi 0, %s46
    %s64 = sphi 0, %s64
    %s66 = sphi 0, %s64
    %s67 = sphi 0, %s66
    %s81 = sphi 0, %s67
    %s87 = sphi 0, %s89
    %s90 = sphi 0, %s87
    %s91 = sphi 0, %s90
    %s107 = sphi 0, %s91
  $region4: #{model_forward.2} parent=0 // loop_header_branch
    %12 = sbr.rel (%p10) target = $region8
  $region5: #{model_forward.2} parent=0 // loop_body
    %s14 = ssub.s32 %s9, 1
    %s15 = ssub.s32 %s9, 2
    %s16 = sadd.s32 %s9, 1
    %s17 = ssub.s32 %s9, %s16
    %p18 = scmp.eq.s32.totalorder %s17, 0
    %s20 = sadd.s32 %s19, 1
    %s21 = scalar_select %p18, %s19, %s20
    %p24 = pneg %p18
    %p25 = scmp.eq.s32.totalorder %s9, 3
    %p26 = por %p24, %p25
    %p27 = scmp.ne.s32.totalorder %s19, %s22
    %p28 = scmp.eq.s32.totalorder %s9, 0
    %p29 = por %p27, %p28
    %p30 = scmp.ne.s32.totalorder %s19, %s22
    %p31 = scmp.eq.s32.totalorder %s14, 3
    %p32 = por %p30, %p31
    %p33 = scmp.ne.s32.totalorder %s22, %s23
    %p34 = scmp.eq.s32.totalorder %s14, 0
    %p35 = por %p33, %p34
    %p36 = scmp.ne.s32.totalorder %s22, %s23
    %p37 = scmp.eq.s32.totalorder %s15, 3
    %p38 = por %p36, %p37
    %p40 = scmp.ne.s32.totalorder %s23, %s39
    %p41 = scmp.eq.s32.totalorder %s15, 0
    %p42 = por %p40, %p41
    %s44 = sadd.s32 %s43, 1
    %p47 = scmp.eq.s32.totalorder %s9, 3
    %p48 = scmp.ne.s32.totalorder %s43, %s45
    %p49 = scmp.eq.s32.totalorder %s9, 0
    %p50 = por %p48, %p49
    %p51 = scmp.ne.s32.totalorder %s43, %s45
    %p52 = scmp.eq.s32.totalorder %s14, 3
    %p53 = por %p51, %p52
    %p54 = scmp.ne.s32.totalorder %s45, %s46
    %p55 = scmp.eq.s32.totalorder %s14, 0
    %p56 = por %p54, %p55
    %p57 = scmp.ne.s32.totalorder %s45, %s46
    %p58 = scmp.eq.s32.totalorder %s15, 3
    %p59 = por %p57, %p58
    %p61 = scmp.ne.s32.totalorder %s46, %s60
    %p62 = scmp.eq.s32.totalorder %s15, 0
    %p63 = por %p61, %p62
    %s65 = sadd.s32 %s64, 1
    %p68 = scmp.eq.s32.totalorder %s9, 3
    %p69 = scmp.ne.s32.totalorder %s64, %s66
    %p70 = scmp.eq.s32.totalorder %s9, 0
    %p71 = por %p69, %p70
    %p72 = scmp.ne.s32.totalorder %s64, %s66
    %p73 = scmp.eq.s32.totalorder %s14, 3
    %p74 = por %p72, %p73
    %p75 = scmp.ne.s32.totalorder %s66, %s67
    %p76 = scmp.eq.s32.totalorder %s14, 0
    %p77 = por %p75, %p76
    %p78 = scmp.ne.s32.totalorder %s66, %s67
    %p79 = scmp.eq.s32.totalorder %s15, 3
    %p80 = por %p78, %p79
    %p82 = scmp.ne.s32.totalorder %s67, %s81
    %p83 = scmp.eq.s32.totalorder %s15, 0
    %p84 = por %p82, %p83
    %s85 = ssub.s32 %s9, %s16
    %p86 = scmp.eq.s32.totalorder %s85, 0
    %s88 = sadd.s32 %s87, 1
    %s89 = scalar_select %p86, %s87, %s88
    %p92 = pneg %p86
    %p93 = scmp.eq.s32.totalorder %s9, 3
    %p94 = por %p92, %p93
    %p95 = scmp.ne.s32.totalorder %s87, %s90
    %p96 = scmp.eq.s32.totalorder %s9, 0
    %p97 = por %p95, %p96
    %p98 = scmp.ne.s32.totalorder %s87, %s90
    %p99 = scmp.eq.s32.totalorder %s14, 3
    %p100 = por %p98, %p99
    %p101 = scmp.ne.s32.totalorder %s90, %s91
    %p102 = scmp.eq.s32.totalorder %s14, 0
    %p103 = por %p101, %p102
    %p104 = scmp.ne.s32.totalorder %s90, %s91
    %p105 = scmp.eq.s32.totalorder %s15, 3
    %p106 = por %p104, %p105
    %p108 = scmp.ne.s32.totalorder %s91, %s107
    %p109 = scmp.eq.s32.totalorder %s15, 0
    %p110 = por %p108, %p109
    %p111 = scmp.le.s32.totalorder 1, %s9
    %p112 = scmp.lt.s32.totalorder %s9, 5
    %p113 = pnand %p111, %p112
    %p114 = pneg %p113
    // Predicated region
    $region9: #{model_forward.2} parent=5 // pred_check
      _
    $region10: #{model_forward.2} parent=5 // pred_check_branch
      %116 = sbr.rel (%p113) target = $region12
    $region11: #{model_forward.2} parent=5 // pred_region
      %s117 = ssub.s32 %s9, 1
      // Predicated region
      $region13: #{model_forward.2} parent=11 // pred_check
        %p118 = pneg %p56
      $region14: #{model_forward.2} parent=11 // pred_check_branch
        %120 = sbr.rel (%p118) target = $region16
      $region15: #{model_forward.2} parent=11 // pred_region
        _
      $region16: #{model_forward.2} parent=11 // pred_fallthru
        _
      // Predicated region
      $region17: #{model_forward.2} parent=11 // pred_check
        %p121 = pneg %p77
      $region18: #{model_forward.2} parent=11 // pred_check_branch
        %123 = sbr.rel (%p121) target = $region20
      $region19: #{model_forward.2} parent=11 // pred_region
        _
      $region20: #{model_forward.2} parent=11 // pred_fallthru
        _
    $region12: #{model_forward.2} parent=5 // pred_fallthru
      _
    %p124 = scmp.lt.s32.totalorder %s9, 4
    // Predicated region
    $region21: #{model_forward.2} parent=5 // pred_check
      %p125 = pneg %p124
    $region22: #{model_forward.2} parent=5 // pred_check_branch
      %127 = sbr.rel (%p125) target = $region24
    $region23: #{model_forward.2} parent=5 // pred_region
      // Predicated region
      $region25: #{model_forward.2} parent=23 // pred_check
        %p128 = pneg %p29
      $region26: #{model_forward.2} parent=23 // pred_check_branch
        %130 = sbr.rel (%p128) target = $region28
      $region27: #{model_forward.2} parent=23 // pred_region
        %p131 = scmp.lt.s32.totalorder %s9, 3
        %s132 = scalar_select %p131, %s9, 3
        %s133 = smul.addr %s132, 32
        %s134 = smul.addr %s133, 2
        %s135 = scalar_lea.vmem %s0, %s134
      $region28: #{model_forward.2} parent=23 // pred_fallthru
        _
    $region24: #{model_forward.2} parent=5 // pred_fallthru
      _
    %p136 = scmp.le.s32.totalorder 1, %s9
    %p137 = scmp.lt.s32.totalorder %s9, 5
    %p138 = pnand %p136, %p137
    %p139 = pneg %p138
    // Predicated region
    $region29: #{model_forward.2} parent=5 // pred_check
      _
    $region30: #{model_forward.2} parent=5 // pred_check_branch
      %141 = sbr.rel (%p138) target = $region32
    $region31: #{model_forward.2} parent=5 // pred_region
      %s142 = ssub.s32 %s9, 1
      %p143 = scmp.lt.s32.totalorder %s14, 3
      %s144 = scalar_select %p143, %s14, 3
      %s145 = smul.addr %s144, 32
      %s146 = smul.addr %s145, 2
      %s147 = scalar_lea.vmem %s0, %s146
      %p148 = pneg %p35
      %p149 = pneg %p32
      %p150 = pneg %p56
      %p151 = pneg %p53
      %p152 = pneg %p77
      %p153 = pneg %p74
      %p154 = pneg %p103
      %p155 = pneg %p100
      %p156 = scmp.lt.s32.totalorder %s14, 3
      %s157 = scalar_select %p156, %s14, 3
      %s158 = scalar_lea.vmem %s3, %s157
      %p159 = scmp.lt.s32.totalorder %s14, 3
      %s160 = scalar_select %p159, %s14, 3
      %s161 = smul.addr %s160, 32
      %s162 = smul.addr %s161, 2
      %s163 = scalar_lea.vmem %s0, %s162
      %p164 = scmp.lt.s32.totalorder %s14, 3
      %s165 = scalar_select %p164, %s14, 3
      %s166 = scalar_lea.vmem %s3, %s165
      %v168 = vld [vmem:[%s163] sm:$0x3]
      %v169 = vpack.c.bf16 %v168, %v168
      %v170 = vld [vmem:[%s1] sm:$0xf]
      %v171 = vld [vmem:[%s1 + $0x4] sm:$0xf]
      %v172 = vld [vmem:[%s1 + $0x8] sm:$0xf]
      %v173 = vld [vmem:[%s1 + $0xc] sm:$0xf]
      %s174 = scalar_lea.vmem %s163, 2
      %v175 = vld [vmem:[%s174] sm:$0x3]
      %v176 = vpack.c.bf16 %v175, %v175
      %s177 = scalar_lea.vmem %s1, 16
      %v178 = vld [vmem:[%s177] sm:$0xf]
      %v179 = vld [vmem:[%s177 + $0x4] sm:$0xf]
      %v180 = vld [vmem:[%s177 + $0x8] sm:$0xf]
      %v181 = vld [vmem:[%s177 + $0xc] sm:$0xf]
      %v186 = vunpack.c.l.b16 %v178
      %v187 = vunpack.c.l.b16 %v179
      %v188 = vunpack.c.l.b16 %v180
      %v189 = vunpack.c.l.b16 %v181
      %v190 = vpack.c.b16 %v187, %v186
      %v191 = vpack.c.b16 %v189, %v188
      %vm194 = vcmask 261120
      %v196 = vsel %vm194, %v176, 0
      %198 = vmatpush.bf16.msra.mxu0 0
      %199 = vmatpush.bf16.msra.mxu0 0
      %200 = vmatpush.bf16.msra.mxu0 0
      %201 = vmatpush.bf16.msra.mxu0 0
      %202 = vmatpush.bf16.msra.mxu0 0
      %203 = vmatpush.bf16.msra.mxu0 0
      %204 = vmatpush.bf16.msra.mxu0 %v191
      %205 = vmatpush.bf16.msra.mxu0 %v190
      %206 = vmatmul.bf16.gmra.mxu0 %v196
      %v207 = vpop.f32.mrf.mxu0
      %v208 = vadd.f32 0.0, %v207
      %v209 = vpop.f32.mrf.mxu0
      %210 = vdwg.mxu0
      %v215 = vunpack.c.l.b16 %v170
      %v216 = vunpack.c.l.b16 %v171
      %v217 = vunpack.c.l.b16 %v172
      %v218 = vunpack.c.l.b16 %v173
      %v219 = vpack.c.b16 %v216, %v215
      %v220 = vpack.c.b16 %v218, %v217
      %v224 = vsel %vm194, %v169, 0
      %226 = vmatpush.bf16.msra.mxu0 0
      %227 = vmatpush.bf16.msra.mxu0 0
      %228 = vmatpush.bf16.msra.mxu0 0
      %229 = vmatpush.bf16.msra.mxu0 0
      %230 = vmatpush.bf16.msra.mxu0 0
      %231 = vmatpush.bf16.msra.mxu0 0
      %232 = vmatpush.bf16.msra.mxu0 %v220
      %233 = vmatpush.bf16.msra.mxu0 %v219
      %234 = vmatmul.bf16.gmra.mxu0 %v224
      %v235 = vpop.f32.mrf.mxu0
      %v236 = vadd.f32 %v208, %v235
      %v237 = vpop.f32.mrf.mxu0
      %238 = vdwg.mxu0
      %s239 = scalar_lea.vmem %s163, 4
      %v240 = vld [vmem:[%s239] sm:$0x3]
      %v241 = vpack.c.bf16 %v240, %v240
      %s242 = scalar_lea.vmem %s1, 32
      %v243 = vld [vmem:[%s242] sm:$0xf]
      %v244 = vld [vmem:[%s242 + $0x4] sm:$0xf]
      %v245 = vld [vmem:[%s242 + $0x8] sm:$0xf]
      %v246 = vld [vmem:[%s242 + $0xc] sm:$0xf]
      %v251 = vunpack.c.l.b16 %v243
      %v252 = vunpack.c.l.b16 %v244
      %v253 = vunpack.c.l.b16 %v245
      %v254 = vunpack.c.l.b16 %v246
      %v255 = vpack.c.b16 %v252, %v251
      %v256 = vpack.c.b16 %v254, %v253
      %v260 = vsel %vm194, %v241, 0
      %262 = vmatpush.bf16.msra.mxu0 0
      %263 = vmatpush.bf16.msra.mxu0 0
      %264 = vmatpush.bf16.msra.mxu0 0
      %265 = vmatpush.bf16.msra.mxu0 0
      %266 = vmatpush.bf16.msra.mxu0 0
      %267 = vmatpush.bf16.msra.mxu0 0
      %268 = vmatpush.bf16.msra.mxu0 %v256
      %269 = vmatpush.bf16.msra.mxu0 %v255
      %270 = vmatmul.bf16.gmra.mxu0 %v260
      %v271 = vpop.f32.mrf.mxu0
      %v272 = vadd.f32 0.0, %v271
      %v273 = vpop.f32.mrf.mxu0
      %274 = vdwg.mxu0
      %v275 = vadd.f32 %v236, %v272
      %s276 = scalar_lea.vmem %s163, 6
      %v277 = vld [vmem:[%s276] sm:$0x3]
      %v278 = vpack.c.bf16 %v277, %v277
      %s279 = scalar_lea.vmem %s1, 48
      %v280 = vld [vmem:[%s279] sm:$0xf]
      %v281 = vld [vmem:[%s279 + $0x4] sm:$0xf]
      %v282 = vld [vmem:[%s279 + $0x8] sm:$0xf]
      %v283 = vld [vmem:[%s279 + $0xc] sm:$0xf]
      %v288 = vunpack.c.l.b16 %v280
      %v289 = vunpack.c.l.b16 %v281
      %v290 = vunpack.c.l.b16 %v282
      %v291 = vunpack.c.l.b16 %v283
      %v292 = vpack.c.b16 %v289, %v288
      %v293 = vpack.c.b16 %v291, %v290
      %v297 = vsel %vm194, %v278, 0
      %299 = vmatpush.bf16.msra.mxu0 0
      %300 = vmatpush.bf16.msra.mxu0 0
      %301 = vmatpush.bf16.msra.mxu0 0
      %302 = vmatpush.bf16.msra.mxu0 0
      %303 = vmatpush.bf16.msra.mxu0 0
      %304 = vmatpush.bf16.msra.mxu0 0
      %305 = vmatpush.bf16.msra.mxu0 %v293
      %306 = vmatpush.bf16.msra.mxu0 %v292
      %307 = vmatmul.bf16.gmra.mxu0 %v297
      %v308 = vpop.f32.mrf.mxu0
      %v309 = vadd.f32 0.0, %v308
      %v310 = vpop.f32.mrf.mxu0
      %311 = vdwg.mxu0
      %v312 = vadd.f32 %v275, %v309
      %s313 = scalar_lea.vmem %s163, 8
      %v314 = vld [vmem:[%s313] sm:$0x3]
      %v315 = vpack.c.bf16 %v314, %v314
      %s316 = scalar_lea.vmem %s1, 64
      %v317 = vld [vmem:[%s316] sm:$0xf]
      %v318 = vld [vmem:[%s316 + $0x4] sm:$0xf]
      %v319 = vld [vmem:[%s316 + $0x8] sm:$0xf]
      %v320 = vld [vmem:[%s316 + $0xc] sm:$0xf]
      %v325 = vunpack.c.l.b16 %v317
      %v326 = vunpack.c.l.b16 %v318
      %v327 = vunpack.c.l.b16 %v319
      %v328 = vunpack.c.l.b16 %v320
      %v329 = vpack.c.b16 %v326, %v325
      %v330 = vpack.c.b16 %v328, %v327
      %v334 = vsel %vm194, %v315, 0
      %336 = vmatpush.bf16.msra.mxu0 0
      %337 = vmatpush.bf16.msra.mxu0 0
      %338 = vmatpush.bf16.msra.mxu0 0
      %339 = vmatpush.bf16.msra.mxu0 0
      %340 = vmatpush.bf16.msra.mxu0 0
      %341 = vmatpush.bf16.msra.mxu0 0
      %342 = vmatpush.bf16.msra.mxu0 %v330
      %343 = vmatpush.bf16.msra.mxu0 %v329
      %344 = vmatmul.bf16.gmra.mxu0 %v334
      %v345 = vpop.f32.mrf.mxu0
      %v346 = vadd.f32 0.0, %v345
      %v347 = vpop.f32.mrf.mxu0
      %348 = vdwg.mxu0
      %v349 = vadd.f32 %v312, %v346
      %s350 = scalar_lea.vmem %s163, 10
      %v351 = vld [vmem:[%s350] sm:$0x3]
      %v352 = vpack.c.bf16 %v351, %v351
      %s353 = scalar_lea.vmem %s1, 80
      %v354 = vld [vmem:[%s353] sm:$0xf]
      %v355 = vld [vmem:[%s353 + $0x4] sm:$0xf]
      %v356 = vld [vmem:[%s353 + $0x8] sm:$0xf]
      %v357 = vld [vmem:[%s353 + $0xc] sm:$0xf]
      %v362 = vunpack.c.l.b16 %v354
      %v363 = vunpack.c.l.b16 %v355
      %v364 = vunpack.c.l.b16 %v356
      %v365 = vunpack.c.l.b16 %v357
      %v366 = vpack.c.b16 %v363, %v362
      %v367 = vpack.c.b16 %v365, %v364
      %v371 = vsel %vm194, %v352, 0
      %373 = vmatpush.bf16.msra.mxu0 0
      %374 = vmatpush.bf16.msra.mxu0 0
      %375 = vmatpush.bf16.msra.mxu0 0
      %376 = vmatpush.bf16.msra.mxu0 0
      %377 = vmatpush.bf16.msra.mxu0 0
      %378 = vmatpush.bf16.msra.mxu0 0
      %379 = vmatpush.bf16.msra.mxu0 %v367
      %380 = vmatpush.bf16.msra.mxu0 %v366
      %381 = vmatmul.bf16.gmra.mxu0 %v371
      %v382 = vpop.f32.mrf.mxu0
      %v383 = vadd.f32 0.0, %v382
      %v384 = vpop.f32.mrf.mxu0
      %385 = vdwg.mxu0
      %v386 = vadd.f32 %v349, %v383
      %s387 = scalar_lea.vmem %s163, 12
      %v388 = vld [vmem:[%s387] sm:$0x3]
      %v389 = vpack.c.bf16 %v388, %v388
      %s390 = scalar_lea.vmem %s1, 96
      %v391 = vld [vmem:[%s390] sm:$0xf]
      %v392 = vld [vmem:[%s390 + $0x4] sm:$0xf]
      %v393 = vld [vmem:[%s390 + $0x8] sm:$0xf]
      %v394 = vld [vmem:[%s390 + $0xc] sm:$0xf]
      %v399 = vunpack.c.l.b16 %v391
      %v400 = vunpack.c.l.b16 %v392
      %v401 = vunpack.c.l.b16 %v393
      %v402 = vunpack.c.l.b16 %v394
      %v403 = vpack.c.b16 %v400, %v399
      %v404 = vpack.c.b16 %v402, %v401
      %v408 = vsel %vm194, %v389, 0
      %410 = vmatpush.bf16.msra.mxu0 0
      %411 = vmatpush.bf16.msra.mxu0 0
      %412 = vmatpush.bf16.msra.mxu0 0
      %413 = vmatpush.bf16.msra.mxu0 0
      %414 = vmatpush.bf16.msra.mxu0 0
      %415 = vmatpush.bf16.msra.mxu0 0
      %416 = vmatpush.bf16.msra.mxu0 %v404
      %417 = vmatpush.bf16.msra.mxu0 %v403
      %418 = vmatmul.bf16.gmra.mxu0 %v408
      %v419 = vpop.f32.mrf.mxu0
      %v420 = vadd.f32 0.0, %v419
      %v421 = vpop.f32.mrf.mxu0
      %422 = vdwg.mxu0
      %v423 = vadd.f32 %v386, %v420
      %s424 = scalar_lea.vmem %s163, 14
      %v425 = vld [vmem:[%s424] sm:$0x3]
      %v426 = vpack.c.bf16 %v425, %v425
      %s427 = scalar_lea.vmem %s1, 112
      %v428 = vld [vmem:[%s427] sm:$0xf]
      %v429 = vld [vmem:[%s427 + $0x4] sm:$0xf]
      %v430 = vld [vmem:[%s427 + $0x8] sm:$0xf]
      %v431 = vld [vmem:[%s427 + $0xc] sm:$0xf]
      %v436 = vunpack.c.l.b16 %v428
      %v437 = vunpack.c.l.b16 %v429
      %v438 = vunpack.c.l.b16 %v430
      %v439 = vunpack.c.l.b16 %v431
      %v440 = vpack.c.b16 %v437, %v436
      %v441 = vpack.c.b16 %v439, %v438
      %v445 = vsel %vm194, %v426, 0
      %447 = vmatpush.bf16.msra.mxu0 0
      %448 = vmatpush.bf16.msra.mxu0 0
      %449 = vmatpush.bf16.msra.mxu0 0
      %450 = vmatpush.bf16.msra.mxu0 0
      %451 = vmatpush.bf16.msra.mxu0 0
      %452 = vmatpush.bf16.msra.mxu0 0
      %453 = vmatpush.bf16.msra.mxu0 %v441
      %454 = vmatpush.bf16.msra.mxu0 %v440
      %455 = vmatmul.bf16.gmra.mxu0 %v445
      %v456 = vpop.f32.mrf.mxu0
      %v457 = vadd.f32 0.0, %v456
      %v458 = vpop.f32.mrf.mxu0
      %459 = vdwg.mxu0
      %v460 = vadd.f32 %v423, %v457
      %s461 = scalar_lea.vmem %s163, 16
      %v462 = vld [vmem:[%s461] sm:$0x3]
      %v463 = vpack.c.bf16 %v462, %v462
      %s464 = scalar_lea.vmem %s1, 128
      %v465 = vld [vmem:[%s464] sm:$0xf]
      %v466 = vld [vmem:[%s464 + $0x4] sm:$0xf]
      %v467 = vld [vmem:[%s464 + $0x8] sm:$0xf]
      %v468 = vld [vmem:[%s464 + $0xc] sm:$0xf]
      %v473 = vunpack.c.l.b16 %v465
      %v474 = vunpack.c.l.b16 %v466
      %v475 = vunpack.c.l.b16 %v467
      %v476 = vunpack.c.l.b16 %v468
      %v477 = vpack.c.b16 %v474, %v473
      %v478 = vpack.c.b16 %v476, %v475
      %v482 = vsel %vm194, %v463, 0
      %484 = vmatpush.bf16.msra.mxu0 0
      %485 = vmatpush.bf16.msra.mxu0 0
      %486 = vmatpush.bf16.msra.mxu0 0
      %487 = vmatpush.bf16.msra.mxu0 0
      %488 = vmatpush.bf16.msra.mxu0 0
      %489 = vmatpush.bf16.msra.mxu0 0
      %490 = vmatpush.bf16.msra.mxu0 %v478
      %491 = vmatpush.bf16.msra.mxu0 %v477
      %492 = vmatmul.bf16.gmra.mxu0 %v482
      %v493 = vpop.f32.mrf.mxu0
      %v494 = vadd.f32 0.0, %v493
      %v495 = vpop.f32.mrf.mxu0
      %496 = vdwg.mxu0
      %v497 = vadd.f32 %v460, %v494
      %s498 = scalar_lea.vmem %s163, 18
      %v499 = vld [vmem:[%s498] sm:$0x3]
      %v500 = vpack.c.bf16 %v499, %v499
      %s501 = scalar_lea.vmem %s1, 144
      %v502 = vld [vmem:[%s501] sm:$0xf]
      %v503 = vld [vmem:[%s501 + $0x4] sm:$0xf]
      %v504 = vld [vmem:[%s501 + $0x8] sm:$0xf]
      %v505 = vld [vmem:[%s501 + $0xc] sm:$0xf]
      %v510 = vunpack.c.l.b16 %v502
      %v511 = vunpack.c.l.b16 %v503
      %v512 = vunpack.c.l.b16 %v504
      %v513 = vunpack.c.l.b16 %v505
      %v514 = vpack.c.b16 %v511, %v510
      %v515 = vpack.c.b16 %v513, %v512
      %v519 = vsel %vm194, %v500, 0
      %521 = vmatpush.bf16.msra.mxu0 0
      %522 = vmatpush.bf16.msra.mxu0 0
      %523 = vmatpush.bf16.msra.mxu0 0
      %524 = vmatpush.bf16.msra.mxu0 0
      %525 = vmatpush.bf16.msra.mxu0 0
      %526 = vmatpush.bf16.msra.mxu0 0
      %527 = vmatpush.bf16.msra.mxu0 %v515
      %528 = vmatpush.bf16.msra.mxu0 %v514
      %529 = vmatmul.bf16.gmra.mxu0 %v519
      %v530 = vpop.f32.mrf.mxu0
      %v531 = vadd.f32 0.0, %v530
      %v532 = vpop.f32.mrf.mxu0
      %533 = vdwg.mxu0
      %v534 = vadd.f32 %v497, %v531
      %s535 = scalar_lea.vmem %s163, 20
      %v536 = vld [vmem:[%s535] sm:$0x3]
      %v537 = vpack.c.bf16 %v536, %v536
      %s538 = scalar_lea.vmem %s1, 160
      %v539 = vld [vmem:[%s538] sm:$0xf]
      %v540 = vld [vmem:[%s538 + $0x4] sm:$0xf]
      %v541 = vld [vmem:[%s538 + $0x8] sm:$0xf]
      %v542 = vld [vmem:[%s538 + $0xc] sm:$0xf]
      %v547 = vunpack.c.l.b16 %v539
      %v548 = vunpack.c.l.b16 %v540
      %v549 = vunpack.c.l.b16 %v541
      %v550 = vunpack.c.l.b16 %v542
      %v551 = vpack.c.b16 %v548, %v547
      %v552 = vpack.c.b16 %v550, %v549
      %v556 = vsel %vm194, %v537, 0
      %558 = vmatpush.bf16.msra.mxu0 0
      %559 = vmatpush.bf16.msra.mxu0 0
      %560 = vmatpush.bf16.msra.mxu0 0
      %561 = vmatpush.bf16.msra.mxu0 0
      %562 = vmatpush.bf16.msra.mxu0 0
      %563 = vmatpush.bf16.msra.mxu0 0
      %564 = vmatpush.bf16.msra.mxu0 %v552
      %565 = vmatpush.bf16.msra.mxu0 %v551
      %566 = vmatmul.bf16.gmra.mxu0 %v556
      %v567 = vpop.f32.mrf.mxu0
      %v568 = vadd.f32 0.0, %v567
      %v569 = vpop.f32.mrf.mxu0
      %570 = vdwg.mxu0
      %v571 = vadd.f32 %v534, %v568
      %s572 = scalar_lea.vmem %s163, 22
      %v573 = vld [vmem:[%s572] sm:$0x3]
      %v574 = vpack.c.bf16 %v573, %v573
      %s575 = scalar_lea.vmem %s1, 176
      %v576 = vld [vmem:[%s575] sm:$0xf]
      %v577 = vld [vmem:[%s575 + $0x4] sm:$0xf]
      %v578 = vld [vmem:[%s575 + $0x8] sm:$0xf]
      %v579 = vld [vmem:[%s575 + $0xc] sm:$0xf]
      %v584 = vunpack.c.l.b16 %v576
      %v585 = vunpack.c.l.b16 %v577
      %v586 = vunpack.c.l.b16 %v578
      %v587 = vunpack.c.l.b16 %v579
      %v588 = vpack.c.b16 %v585, %v584
      %v589 = vpack.c.b16 %v587, %v586
      %v593 = vsel %vm194, %v574, 0
      %595 = vmatpush.bf16.msra.mxu0 0
      %596 = vmatpush.bf16.msra.mxu0 0
      %597 = vmatpush.bf16.msra.mxu0 0
      %598 = vmatpush.bf16.msra.mxu0 0
      %599 = vmatpush.bf16.msra.mxu0 0
      %600 = vmatpush.bf16.msra.mxu0 0
      %601 = vmatpush.bf16.msra.mxu0 %v589
      %602 = vmatpush.bf16.msra.mxu0 %v588
      %603 = vmatmul.bf16.gmra.mxu0 %v593
      %v604 = vpop.f32.mrf.mxu0
      %v605 = vadd.f32 0.0, %v604
      %v606 = vpop.f32.mrf.mxu0
      %607 = vdwg.mxu0
      %v608 = vadd.f32 %v571, %v605
      %s609 = scalar_lea.vmem %s163, 24
      %v610 = vld [vmem:[%s609] sm:$0x3]
      %v611 = vpack.c.bf16 %v610, %v610
      %s612 = scalar_lea.vmem %s1, 192
      %v613 = vld [vmem:[%s612] sm:$0xf]
      %v614 = vld [vmem:[%s612 + $0x4] sm:$0xf]
      %v615 = vld [vmem:[%s612 + $0x8] sm:$0xf]
      %v616 = vld [vmem:[%s612 + $0xc] sm:$0xf]
      %v621 = vunpack.c.l.b16 %v613
      %v622 = vunpack.c.l.b16 %v614
      %v623 = vunpack.c.l.b16 %v615
      %v624 = vunpack.c.l.b16 %v616
      %v625 = vpack.c.b16 %v622, %v621
      %v626 = vpack.c.b16 %v624, %v623
      %v630 = vsel %vm194, %v611, 0
      %632 = vmatpush.bf16.msra.mxu0 0
      %633 = vmatpush.bf16.msra.mxu0 0
      %634 = vmatpush.bf16.msra.mxu0 0
      %635 = vmatpush.bf16.msra.mxu0 0
      %636 = vmatpush.bf16.msra.mxu0 0
      %637 = vmatpush.bf16.msra.mxu0 0
      %638 = vmatpush.bf16.msra.mxu0 %v626
      %639 = vmatpush.bf16.msra.mxu0 %v625
      %640 = vmatmul.bf16.gmra.mxu0 %v630
      %v641 = vpop.f32.mrf.mxu0
      %v642 = vadd.f32 0.0, %v641
      %v643 = vpop.f32.mrf.mxu0
      %644 = vdwg.mxu0
      %v645 = vadd.f32 %v608, %v642
      %s646 = scalar_lea.vmem %s163, 26
      %v647 = vld [vmem:[%s646] sm:$0x3]
      %v648 = vpack.c.bf16 %v647, %v647
      %s649 = scalar_lea.vmem %s1, 208
      %v650 = vld [vmem:[%s649] sm:$0xf]
      %v651 = vld [vmem:[%s649 + $0x4] sm:$0xf]
      %v652 = vld [vmem:[%s649 + $0x8] sm:$0xf]
      %v653 = vld [vmem:[%s649 + $0xc] sm:$0xf]
      %v658 = vunpack.c.l.b16 %v650
      %v659 = vunpack.c.l.b16 %v651
      %v660 = vunpack.c.l.b16 %v652
      %v661 = vunpack.c.l.b16 %v653
      %v662 = vpack.c.b16 %v659, %v658
      %v663 = vpack.c.b16 %v661, %v660
      %v667 = vsel %vm194, %v648, 0
      %669 = vmatpush.bf16.msra.mxu0 0
      %670 = vmatpush.bf16.msra.mxu0 0
      %671 = vmatpush.bf16.msra.mxu0 0
      %672 = vmatpush.bf16.msra.mxu0 0
      %673 = vmatpush.bf16.msra.mxu0 0
      %674 = vmatpush.bf16.msra.mxu0 0
      %675 = vmatpush.bf16.msra.mxu0 %v663
      %676 = vmatpush.bf16.msra.mxu0 %v662
      %677 = vmatmul.bf16.gmra.mxu0 %v667
      %v678 = vpop.f32.mrf.mxu0
      %v679 = vadd.f32 0.0, %v678
      %v680 = vpop.f32.mrf.mxu0
      %681 = vdwg.mxu0
      %v682 = vadd.f32 %v645, %v679
      %s683 = scalar_lea.vmem %s163, 28
      %v684 = vld [vmem:[%s683] sm:$0x3]
      %v685 = vpack.c.bf16 %v684, %v684
      %s686 = scalar_lea.vmem %s1, 224
      %v687 = vld [vmem:[%s686] sm:$0xf]
      %v688 = vld [vmem:[%s686 + $0x4] sm:$0xf]
      %v689 = vld [vmem:[%s686 + $0x8] sm:$0xf]
      %v690 = vld [vmem:[%s686 + $0xc] sm:$0xf]
      %v695 = vunpack.c.l.b16 %v687
      %v696 = vunpack.c.l.b16 %v688
      %v697 = vunpack.c.l.b16 %v689
      %v698 = vunpack.c.l.b16 %v690
      %v699 = vpack.c.b16 %v696, %v695
      %v700 = vpack.c.b16 %v698, %v697
      %v704 = vsel %vm194, %v685, 0
      %706 = vmatpush.bf16.msra.mxu0 0
      %707 = vmatpush.bf16.msra.mxu0 0
      %708 = vmatpush.bf16.msra.mxu0 0
      %709 = vmatpush.bf16.msra.mxu0 0
      %710 = vmatpush.bf16.msra.mxu0 0
      %711 = vmatpush.bf16.msra.mxu0 0
      %712 = vmatpush.bf16.msra.mxu0 %v700
      %713 = vmatpush.bf16.msra.mxu0 %v699
      %714 = vmatmul.bf16.gmra.mxu0 %v704
      %v715 = vpop.f32.mrf.mxu0
      %v716 = vadd.f32 0.0, %v715
      %v717 = vpop.f32.mrf.mxu0
      %718 = vdwg.mxu0
      %v719 = vadd.f32 %v682, %v716
      %s720 = scalar_lea.vmem %s163, 30
      %v721 = vld [vmem:[%s720] sm:$0x3]
      %v722 = vpack.c.bf16 %v721, %v721
      %s723 = scalar_lea.vmem %s1, 240
      %v724 = vld [vmem:[%s723] sm:$0xf]
      %v725 = vld [vmem:[%s723 + $0x4] sm:$0xf]
      %v726 = vld [vmem:[%s723 + $0x8] sm:$0xf]
      %v727 = vld [vmem:[%s723 + $0xc] sm:$0xf]
      %v732 = vunpack.c.l.b16 %v724
      %v733 = vunpack.c.l.b16 %v725
      %v734 = vunpack.c.l.b16 %v726
      %v735 = vunpack.c.l.b16 %v727
      %v736 = vpack.c.b16 %v733, %v732
      %v737 = vpack.c.b16 %v735, %v734
      %v741 = vsel %vm194, %v722, 0
      %743 = vmatpush.bf16.msra.mxu0 0
      %744 = vmatpush.bf16.msra.mxu0 0
      %745 = vmatpush.bf16.msra.mxu0 0
      %746 = vmatpush.bf16.msra.mxu0 0
      %747 = vmatpush.bf16.msra.mxu0 0
      %748 = vmatpush.bf16.msra.mxu0 0
      %749 = vmatpush.bf16.msra.mxu0 %v737
      %750 = vmatpush.bf16.msra.mxu0 %v736
      %751 = vmatmul.bf16.gmra.mxu0 %v741
      %v752 = vpop.f32.mrf.mxu0
      %v753 = vadd.f32 0.0, %v752
      %v754 = vpop.f32.mrf.mxu0
      %755 = vdwg.mxu0
      %v756 = vadd.f32 %v719, %v753
      %s757 = scalar_lea.vmem %s163, 32
      %v758 = vld [vmem:[%s757] sm:$0x3]
      %v759 = vpack.c.bf16 %v758, %v758
      %s760 = scalar_lea.vmem %s1, 256
      %v761 = vld [vmem:[%s760] sm:$0xf]
      %v762 = vld [vmem:[%s760 + $0x4] sm:$0xf]
      %v763 = vld [vmem:[%s760 + $0x8] sm:$0xf]
      %v764 = vld [vmem:[%s760 + $0xc] sm:$0xf]
      %v769 = vunpack.c.l.b16 %v761
      %v770 = vunpack.c.l.b16 %v762
      %v771 = vunpack.c.l.b16 %v763
      %v772 = vunpack.c.l.b16 %v764
      %v773 = vpack.c.b16 %v770, %v769
      %v774 = vpack.c.b16 %v772, %v771
      %v778 = vsel %vm194, %v759, 0
      %780 = vmatpush.bf16.msra.mxu0 0
      %781 = vmatpush.bf16.msra.mxu0 0
      %782 = vmatpush.bf16.msra.mxu0 0
      %783 = vmatpush.bf16.msra.mxu0 0
      %784 = vmatpush.bf16.msra.mxu0 0
      %785 = vmatpush.bf16.msra.mxu0 0
      %786 = vmatpush.bf16.msra.mxu0 %v774
      %787 = vmatpush.bf16.msra.mxu0 %v773
      %788 = vmatmul.bf16.gmra.mxu0 %v778
      %v789 = vpop.f32.mrf.mxu0
      %v790 = vadd.f32 0.0, %v789
      %v791 = vpop.f32.mrf.mxu0
      %792 = vdwg.mxu0
      %v793 = vadd.f32 %v756, %v790
      %s794 = scalar_lea.vmem %s163, 34
      %v795 = vld [vmem:[%s794] sm:$0x3]
      %v796 = vpack.c.bf16 %v795, %v795
      %s797 = scalar_lea.vmem %s1, 272
      %v798 = vld [vmem:[%s797] sm:$0xf]
      %v799 = vld [vmem:[%s797 + $0x4] sm:$0xf]
      %v800 = vld [vmem:[%s797 + $0x8] sm:$0xf]
      %v801 = vld [vmem:[%s797 + $0xc] sm:$0xf]
      %v806 = vunpack.c.l.b16 %v798
      %v807 = vunpack.c.l.b16 %v799
      %v808 = vunpack.c.l.b16 %v800
      %v809 = vunpack.c.l.b16 %v801
      %v810 = vpack.c.b16 %v807, %v806
      %v811 = vpack.c.b16 %v809, %v808
      %v815 = vsel %vm194, %v796, 0
      %817 = vmatpush.bf16.msra.mxu0 0
      %818 = vmatpush.bf16.msra.mxu0 0
      %819 = vmatpush.bf16.msra.mxu0 0
      %820 = vmatpush.bf16.msra.mxu0 0
      %821 = vmatpush.bf16.msra.mxu0 0
      %822 = vmatpush.bf16.msra.mxu0 0
      %823 = vmatpush.bf16.msra.mxu0 %v811
      %824 = vmatpush.bf16.msra.mxu0 %v810
      %825 = vmatmul.bf16.gmra.mxu0 %v815
      %v826 = vpop.f32.mrf.mxu0
      %v827 = vadd.f32 0.0, %v826
      %v828 = vpop.f32.mrf.mxu0
      %829 = vdwg.mxu0
      %v830 = vadd.f32 %v793, %v827
      %s831 = scalar_lea.vmem %s163, 36
      %v832 = vld [vmem:[%s831] sm:$0x3]
      %v833 = vpack.c.bf16 %v832, %v832
      %s834 = scalar_lea.vmem %s1, 288
      %v835 = vld [vmem:[%s834] sm:$0xf]
      %v836 = vld [vmem:[%s834 + $0x4] sm:$0xf]
      %v837 = vld [vmem:[%s834 + $0x8] sm:$0xf]
      %v838 = vld [vmem:[%s834 + $0xc] sm:$0xf]
      %v843 = vunpack.c.l.b16 %v835
      %v844 = vunpack.c.l.b16 %v836
      %v845 = vunpack.c.l.b16 %v837
      %v846 = vunpack.c.l.b16 %v838
      %v847 = vpack.c.b16 %v844, %v843
      %v848 = vpack.c.b16 %v846, %v845
      %v852 = vsel %vm194, %v833, 0
      %854 = vmatpush.bf16.msra.mxu0 0
      %855 = vmatpush.bf16.msra.mxu0 0
      %856 = vmatpush.bf16.msra.mxu0 0
      %857 = vmatpush.bf16.msra.mxu0 0
      %858 = vmatpush.bf16.msra.mxu0 0
      %859 = vmatpush.bf16.msra.mxu0 0
      %860 = vmatpush.bf16.msra.mxu0 %v848
      %861 = vmatpush.bf16.msra.mxu0 %v847
      %862 = vmatmul.bf16.gmra.mxu0 %v852
      %v863 = vpop.f32.mrf.mxu0
      %v864 = vadd.f32 0.0, %v863
      %v865 = vpop.f32.mrf.mxu0
      %866 = vdwg.mxu0
      %v867 = vadd.f32 %v830, %v864
      %s868 = scalar_lea.vmem %s163, 38
      %v869 = vld [vmem:[%s868] sm:$0x3]
      %v870 = vpack.c.bf16 %v869, %v869
      %s871 = scalar_lea.vmem %s1, 304
      %v872 = vld [vmem:[%s871] sm:$0xf]
      %v873 = vld [vmem:[%s871 + $0x4] sm:$0xf]
      %v874 = vld [vmem:[%s871 + $0x8] sm:$0xf]
      %v875 = vld [vmem:[%s871 + $0xc] sm:$0xf]
      %v880 = vunpack.c.l.b16 %v872
      %v881 = vunpack.c.l.b16 %v873
      %v882 = vunpack.c.l.b16 %v874
      %v883 = vunpack.c.l.b16 %v875
      %v884 = vpack.c.b16 %v881, %v880
      %v885 = vpack.c.b16 %v883, %v882
      %v889 = vsel %vm194, %v870, 0
      %891 = vmatpush.bf16.msra.mxu0 0
      %892 = vmatpush.bf16.msra.mxu0 0
      %893 = vmatpush.bf16.msra.mxu0 0
      %894 = vmatpush.bf16.msra.mxu0 0
      %895 = vmatpush.bf16.msra.mxu0 0
      %896 = vmatpush.bf16.msra.mxu0 0
      %897 = vmatpush.bf16.msra.mxu0 %v885
      %898 = vmatpush.bf16.msra.mxu0 %v884
      %899 = vmatmul.bf16.gmra.mxu0 %v889
      %v900 = vpop.f32.mrf.mxu0
      %v901 = vadd.f32 0.0, %v900
      %v902 = vpop.f32.mrf.mxu0
      %903 = vdwg.mxu0
      %v904 = vadd.f32 %v867, %v901
      %s905 = scalar_lea.vmem %s163, 40
      %v906 = vld [vmem:[%s905] sm:$0x3]
      %v907 = vpack.c.bf16 %v906, %v906
      %s908 = scalar_lea.vmem %s1, 320
      %v909 = vld [vmem:[%s908] sm:$0xf]
      %v910 = vld [vmem:[%s908 + $0x4] sm:$0xf]
      %v911 = vld [vmem:[%s908 + $0x8] sm:$0xf]
      %v912 = vld [vmem:[%s908 + $0xc] sm:$0xf]
      %v917 = vunpack.c.l.b16 %v909
      %v918 = vunpack.c.l.b16 %v910
      %v919 = vunpack.c.l.b16 %v911
      %v920 = vunpack.c.l.b16 %v912
      %v921 = vpack.c.b16 %v918, %v917
      %v922 = vpack.c.b16 %v920, %v919
      %v926 = vsel %vm194, %v907, 0
      %928 = vmatpush.bf16.msra.mxu0 0
      %929 = vmatpush.bf16.msra.mxu0 0
      %930 = vmatpush.bf16.msra.mxu0 0
      %931 = vmatpush.bf16.msra.mxu0 0
      %932 = vmatpush.bf16.msra.mxu0 0
      %933 = vmatpush.bf16.msra.mxu0 0
      %934 = vmatpush.bf16.msra.mxu0 %v922
      %935 = vmatpush.bf16.msra.mxu0 %v921
      %936 = vmatmul.bf16.gmra.mxu0 %v926
      %v937 = vpop.f32.mrf.mxu0
      %v938 = vadd.f32 0.0, %v937
      %v939 = vpop.f32.mrf.mxu0
      %940 = vdwg.mxu0
      %v941 = vadd.f32 %v904, %v938
      %s942 = scalar_lea.vmem %s163, 42
      %v943 = vld [vmem:[%s942] sm:$0x3]
      %v944 = vpack.c.bf16 %v943, %v943
      %s945 = scalar_lea.vmem %s1, 336
      %v946 = vld [vmem:[%s945] sm:$0xf]
      %v947 = vld [vmem:[%s945 + $0x4] sm:$0xf]
      %v948 = vld [vmem:[%s945 + $0x8] sm:$0xf]
      %v949 = vld [vmem:[%s945 + $0xc] sm:$0xf]
      %v954 = vunpack.c.l.b16 %v946
      %v955 = vunpack.c.l.b16 %v947
      %v956 = vunpack.c.l.b16 %v948
      %v957 = vunpack.c.l.b16 %v949
      %v958 = vpack.c.b16 %v955, %v954
      %v959 = vpack.c.b16 %v957, %v956
      %v963 = vsel %vm194, %v944, 0
      %965 = vmatpush.bf16.msra.mxu0 0
      %966 = vmatpush.bf16.msra.mxu0 0
      %967 = vmatpush.bf16.msra.mxu0 0
      %968 = vmatpush.bf16.msra.mxu0 0
      %969 = vmatpush.bf16.msra.mxu0 0
      %970 = vmatpush.bf16.msra.mxu0 0
      %971 = vmatpush.bf16.msra.mxu0 %v959
      %972 = vmatpush.bf16.msra.mxu0 %v958
      %973 = vmatmul.bf16.gmra.mxu0 %v963
      %v974 = vpop.f32.mrf.mxu0
      %v975 = vadd.f32 0.0, %v974
      %v976 = vpop.f32.mrf.mxu0
      %977 = vdwg.mxu0
      %v978 = vadd.f32 %v941, %v975
      %s979 = scalar_lea.vmem %s163, 44
      %v980 = vld [vmem:[%s979] sm:$0x3]
      %v981 = vpack.c.bf16 %v980, %v980
      %s982 = scalar_lea.vmem %s1, 352
      %v983 = vld [vmem:[%s982] sm:$0xf]
      %v984 = vld [vmem:[%s982 + $0x4] sm:$0xf]
      %v985 = vld [vmem:[%s982 + $0x8] sm:$0xf]
      %v986 = vld [vmem:[%s982 + $0xc] sm:$0xf]
      %v991 = vunpack.c.l.b16 %v983
      %v992 = vunpack.c.l.b16 %v984
      %v993 = vunpack.c.l.b16 %v985
      %v994 = vunpack.c.l.b16 %v986
      %v995 = vpack.c.b16 %v992, %v991
      %v996 = vpack.c.b16 %v994, %v993
      %v1000 = vsel %vm194, %v981, 0
      %1002 = vmatpush.bf16.msra.mxu0 0
      %1003 = vmatpush.bf16.msra.mxu0 0
      %1004 = vmatpush.bf16.msra.mxu0 0
      %1005 = vmatpush.bf16.msra.mxu0 0
      %1006 = vmatpush.bf16.msra.mxu0 0
      %1007 = vmatpush.bf16.msra.mxu0 0
      %1008 = vmatpush.bf16.msra.mxu0 %v996
      %1009 = vmatpush.bf16.msra.mxu0 %v995
      %1010 = vmatmul.bf16.gmra.mxu0 %v1000
      %v1011 = vpop.f32.mrf.mxu0
      %v1012 = vadd.f32 0.0, %v1011
      %v1013 = vpop.f32.mrf.mxu0
      %1014 = vdwg.mxu0
      %v1015 = vadd.f32 %v978, %v1012
      %s1016 = scalar_lea.vmem %s163, 46
      %v1017 = vld [vmem:[%s1016] sm:$0x3]
      %v1018 = vpack.c.bf16 %v1017, %v1017
      %s1019 = scalar_lea.vmem %s1, 368
      %v1020 = vld [vmem:[%s1019] sm:$0xf]
      %v1021 = vld [vmem:[%s1019 + $0x4] sm:$0xf]
      %v1022 = vld [vmem:[%s1019 + $0x8] sm:$0xf]
      %v1023 = vld [vmem:[%s1019 + $0xc] sm:$0xf]
      %v1028 = vunpack.c.l.b16 %v1020
      %v1029 = vunpack.c.l.b16 %v1021
      %v1030 = vunpack.c.l.b16 %v1022
      %v1031 = vunpack.c.l.b16 %v1023
      %v1032 = vpack.c.b16 %v1029, %v1028
      %v1033 = vpack.c.b16 %v1031, %v1030
      %v1037 = vsel %vm194, %v1018, 0
      %1039 = vmatpush.bf16.msra.mxu0 0
      %1040 = vmatpush.bf16.msra.mxu0 0
      %1041 = vmatpush.bf16.msra.mxu0 0
      %1042 = vmatpush.bf16.msra.mxu0 0
      %1043 = vmatpush.bf16.msra.mxu0 0
      %1044 = vmatpush.bf16.msra.mxu0 0
      %1045 = vmatpush.bf16.msra.mxu0 %v1033
      %1046 = vmatpush.bf16.msra.mxu0 %v1032
      %1047 = vmatmul.bf16.gmra.mxu0 %v1037
      %v1048 = vpop.f32.mrf.mxu0
      %v1049 = vadd.f32 0.0, %v1048
      %v1050 = vpop.f32.mrf.mxu0
      %1051 = vdwg.mxu0
      %v1052 = vadd.f32 %v1015, %v1049
      %s1053 = scalar_lea.vmem %s163, 48
      %v1054 = vld [vmem:[%s1053] sm:$0x3]
      %v1055 = vpack.c.bf16 %v1054, %v1054
      %s1056 = scalar_lea.vmem %s1, 384
      %v1057 = vld [vmem:[%s1056] sm:$0xf]
      %v1058 = vld [vmem:[%s1056 + $0x4] sm:$0xf]
      %v1059 = vld [vmem:[%s1056 + $0x8] sm:$0xf]
      %v1060 = vld [vmem:[%s1056 + $0xc] sm:$0xf]
      %v1065 = vunpack.c.l.b16 %v1057
      %v1066 = vunpack.c.l.b16 %v1058
      %v1067 = vunpack.c.l.b16 %v1059
      %v1068 = vunpack.c.l.b16 %v1060
      %v1069 = vpack.c.b16 %v1066, %v1065
      %v1070 = vpack.c.b16 %v1068, %v1067
      %v1074 = vsel %vm194, %v1055, 0
      %1076 = vmatpush.bf16.msra.mxu0 0
      %1077 = vmatpush.bf16.msra.mxu0 0
      %1078 = vmatpush.bf16.msra.mxu0 0
      %1079 = vmatpush.bf16.msra.mxu0 0
      %1080 = vmatpush.bf16.msra.mxu0 0
      %1081 = vmatpush.bf16.msra.mxu0 0
      %1082 = vmatpush.bf16.msra.mxu0 %v1070
      %1083 = vmatpush.bf16.msra.mxu0 %v1069
      %1084 = vmatmul.bf16.gmra.mxu0 %v1074
      %v1085 = vpop.f32.mrf.mxu0
      %v1086 = vadd.f32 0.0, %v1085
      %v1087 = vpop.f32.mrf.mxu0
      %1088 = vdwg.mxu0
      %v1089 = vadd.f32 %v1052, %v1086
      %s1090 = scalar_lea.vmem %s163, 50
      %v1091 = vld [vmem:[%s1090] sm:$0x3]
      %v1092 = vpack.c.bf16 %v1091, %v1091
      %s1093 = scalar_lea.vmem %s1, 400
      %v1094 = vld [vmem:[%s1093] sm:$0xf]
      %v1095 = vld [vmem:[%s1093 + $0x4] sm:$0xf]
      %v1096 = vld [vmem:[%s1093 + $0x8] sm:$0xf]
      %v1097 = vld [vmem:[%s1093 + $0xc] sm:$0xf]
      %v1102 = vunpack.c.l.b16 %v1094
      %v1103 = vunpack.c.l.b16 %v1095
      %v1104 = vunpack.c.l.b16 %v1096
      %v1105 = vunpack.c.l.b16 %v1097
      %v1106 = vpack.c.b16 %v1103, %v1102
      %v1107 = vpack.c.b16 %v1105, %v1104
      %v1111 = vsel %vm194, %v1092, 0
      %1113 = vmatpush.bf16.msra.mxu0 0
      %1114 = vmatpush.bf16.msra.mxu0 0
      %1115 = vmatpush.bf16.msra.mxu0 0
      %1116 = vmatpush.bf16.msra.mxu0 0
      %1117 = vmatpush.bf16.msra.mxu0 0
      %1118 = vmatpush.bf16.msra.mxu0 0
      %1119 = vmatpush.bf16.msra.mxu0 %v1107
      %1120 = vmatpush.bf16.msra.mxu0 %v1106
      %1121 = vmatmul.bf16.gmra.mxu0 %v1111
      %v1122 = vpop.f32.mrf.mxu0
      %v1123 = vadd.f32 0.0, %v1122
      %v1124 = vpop.f32.mrf.mxu0
      %1125 = vdwg.mxu0
      %v1126 = vadd.f32 %v1089, %v1123
      %s1127 = scalar_lea.vmem %s163, 52
      %v1128 = vld [vmem:[%s1127] sm:$0x3]
      %v1129 = vpack.c.bf16 %v1128, %v1128
      %s1130 = scalar_lea.vmem %s1, 416
      %v1131 = vld [vmem:[%s1130] sm:$0xf]
      %v1132 = vld [vmem:[%s1130 + $0x4] sm:$0xf]
      %v1133 = vld [vmem:[%s1130 + $0x8] sm:$0xf]
      %v1134 = vld [vmem:[%s1130 + $0xc] sm:$0xf]
      %v1139 = vunpack.c.l.b16 %v1131
      %v1140 = vunpack.c.l.b16 %v1132
      %v1141 = vunpack.c.l.b16 %v1133
      %v1142 = vunpack.c.l.b16 %v1134
      %v1143 = vpack.c.b16 %v1140, %v1139
      %v1144 = vpack.c.b16 %v1142, %v1141
      %v1148 = vsel %vm194, %v1129, 0
      %1150 = vmatpush.bf16.msra.mxu0 0
      %1151 = vmatpush.bf16.msra.mxu0 0
      %1152 = vmatpush.bf16.msra.mxu0 0
      %1153 = vmatpush.bf16.msra.mxu0 0
      %1154 = vmatpush.bf16.msra.mxu0 0
      %1155 = vmatpush.bf16.msra.mxu0 0
      %1156 = vmatpush.bf16.msra.mxu0 %v1144
      %1157 = vmatpush.bf16.msra.mxu0 %v1143
      %1158 = vmatmul.bf16.gmra.mxu0 %v1148
      %v1159 = vpop.f32.mrf.mxu0
      %v1160 = vadd.f32 0.0, %v1159
      %v1161 = vpop.f32.mrf.mxu0
      %1162 = vdwg.mxu0
      %v1163 = vadd.f32 %v1126, %v1160
      %s1164 = scalar_lea.vmem %s163, 54
      %v1165 = vld [vmem:[%s1164] sm:$0x3]
      %v1166 = vpack.c.bf16 %v1165, %v1165
      %s1167 = scalar_lea.vmem %s1, 432
      %v1168 = vld [vmem:[%s1167] sm:$0xf]
      %v1169 = vld [vmem:[%s1167 + $0x4] sm:$0xf]
      %v1170 = vld [vmem:[%s1167 + $0x8] sm:$0xf]
      %v1171 = vld [vmem:[%s1167 + $0xc] sm:$0xf]
      %v1176 = vunpack.c.l.b16 %v1168
      %v1177 = vunpack.c.l.b16 %v1169
      %v1178 = vunpack.c.l.b16 %v1170
      %v1179 = vunpack.c.l.b16 %v1171
      %v1180 = vpack.c.b16 %v1177, %v1176
      %v1181 = vpack.c.b16 %v1179, %v1178
      %v1185 = vsel %vm194, %v1166, 0
      %1187 = vmatpush.bf16.msra.mxu0 0
      %1188 = vmatpush.bf16.msra.mxu0 0
      %1189 = vmatpush.bf16.msra.mxu0 0
      %1190 = vmatpush.bf16.msra.mxu0 0
      %1191 = vmatpush.bf16.msra.mxu0 0
      %1192 = vmatpush.bf16.msra.mxu0 0
      %1193 = vmatpush.bf16.msra.mxu0 %v1181
      %1194 = vmatpush.bf16.msra.mxu0 %v1180
      %1195 = vmatmul.bf16.gmra.mxu0 %v1185
      %v1196 = vpop.f32.mrf.mxu0
      %v1197 = vadd.f32 0.0, %v1196
      %v1198 = vpop.f32.mrf.mxu0
      %1199 = vdwg.mxu0
      %v1200 = vadd.f32 %v1163, %v1197
      %s1201 = scalar_lea.vmem %s163, 56
      %v1202 = vld [vmem:[%s1201] sm:$0x3]
      %v1203 = vpack.c.bf16 %v1202, %v1202
      %s1204 = scalar_lea.vmem %s1, 448
      %v1205 = vld [vmem:[%s1204] sm:$0xf]
      %v1206 = vld [vmem:[%s1204 + $0x4] sm:$0xf]
      %v1207 = vld [vmem:[%s1204 + $0x8] sm:$0xf]
      %v1208 = vld [vmem:[%s1204 + $0xc] sm:$0xf]
      %v1213 = vunpack.c.l.b16 %v1205
      %v1214 = vunpack.c.l.b16 %v1206
      %v1215 = vunpack.c.l.b16 %v1207
      %v1216 = vunpack.c.l.b16 %v1208
      %v1217 = vpack.c.b16 %v1214, %v1213
      %v1218 = vpack.c.b16 %v1216, %v1215
      %v1222 = vsel %vm194, %v1203, 0
      %1224 = vmatpush.bf16.msra.mxu0 0
      %1225 = vmatpush.bf16.msra.mxu0 0
      %1226 = vmatpush.bf16.msra.mxu0 0
      %1227 = vmatpush.bf16.msra.mxu0 0
      %1228 = vmatpush.bf16.msra.mxu0 0
      %1229 = vmatpush.bf16.msra.mxu0 0
      %1230 = vmatpush.bf16.msra.mxu0 %v1218
      %1231 = vmatpush.bf16.msra.mxu0 %v1217
      %1232 = vmatmul.bf16.gmra.mxu0 %v1222
      %v1233 = vpop.f32.mrf.mxu0
      %v1234 = vadd.f32 0.0, %v1233
      %v1235 = vpop.f32.mrf.mxu0
      %1236 = vdwg.mxu0
      %v1237 = vadd.f32 %v1200, %v1234
      %s1238 = scalar_lea.vmem %s163, 58
      %v1239 = vld [vmem:[%s1238] sm:$0x3]
      %v1240 = vpack.c.bf16 %v1239, %v1239
      %s1241 = scalar_lea.vmem %s1, 464
      %v1242 = vld [vmem:[%s1241] sm:$0xf]
      %v1243 = vld [vmem:[%s1241 + $0x4] sm:$0xf]
      %v1244 = vld [vmem:[%s1241 + $0x8] sm:$0xf]
      %v1245 = vld [vmem:[%s1241 + $0xc] sm:$0xf]
      %v1250 = vunpack.c.l.b16 %v1242
      %v1251 = vunpack.c.l.b16 %v1243
      %v1252 = vunpack.c.l.b16 %v1244
      %v1253 = vunpack.c.l.b16 %v1245
      %v1254 = vpack.c.b16 %v1251, %v1250
      %v1255 = vpack.c.b16 %v1253, %v1252
      %v1259 = vsel %vm194, %v1240, 0
      %1261 = vmatpush.bf16.msra.mxu0 0
      %1262 = vmatpush.bf16.msra.mxu0 0
      %1263 = vmatpush.bf16.msra.mxu0 0
      %1264 = vmatpush.bf16.msra.mxu0 0
      %1265 = vmatpush.bf16.msra.mxu0 0
      %1266 = vmatpush.bf16.msra.mxu0 0
      %1267 = vmatpush.bf16.msra.mxu0 %v1255
      %1268 = vmatpush.bf16.msra.mxu0 %v1254
      %1269 = vmatmul.bf16.gmra.mxu0 %v1259
      %v1270 = vpop.f32.mrf.mxu0
      %v1271 = vadd.f32 0.0, %v1270
      %v1272 = vpop.f32.mrf.mxu0
      %1273 = vdwg.mxu0
      %v1274 = vadd.f32 %v1237, %v1271
      %s1275 = scalar_lea.vmem %s163, 60
      %v1276 = vld [vmem:[%s1275] sm:$0x3]
      %v1277 = vpack.c.bf16 %v1276, %v1276
      %s1278 = scalar_lea.vmem %s1, 480
      %v1279 = vld [vmem:[%s1278] sm:$0xf]
      %v1280 = vld [vmem:[%s1278 + $0x4] sm:$0xf]
      %v1281 = vld [vmem:[%s1278 + $0x8] sm:$0xf]
      %v1282 = vld [vmem:[%s1278 + $0xc] sm:$0xf]
      %v1287 = vunpack.c.l.b16 %v1279
      %v1288 = vunpack.c.l.b16 %v1280
      %v1289 = vunpack.c.l.b16 %v1281
      %v1290 = vunpack.c.l.b16 %v1282
      %v1291 = vpack.c.b16 %v1288, %v1287
      %v1292 = vpack.c.b16 %v1290, %v1289
      %v1296 = vsel %vm194, %v1277, 0
      %1298 = vmatpush.bf16.msra.mxu0 0
      %1299 = vmatpush.bf16.msra.mxu0 0
      %1300 = vmatpush.bf16.msra.mxu0 0
      %1301 = vmatpush.bf16.msra.mxu0 0
      %1302 = vmatpush.bf16.msra.mxu0 0
      %1303 = vmatpush.bf16.msra.mxu0 0
      %1304 = vmatpush.bf16.msra.mxu0 %v1292
      %1305 = vmatpush.bf16.msra.mxu0 %v1291
      %1306 = vmatmul.bf16.gmra.mxu0 %v1296
      %v1307 = vpop.f32.mrf.mxu0
      %v1308 = vadd.f32 0.0, %v1307
      %v1309 = vpop.f32.mrf.mxu0
      %1310 = vdwg.mxu0
      %v1311 = vadd.f32 %v1274, %v1308
      %s1312 = scalar_lea.vmem %s163, 62
      %v1313 = vld [vmem:[%s1312] sm:$0x3]
      %v1314 = vpack.c.bf16 %v1313, %v1313
      %s1315 = scalar_lea.vmem %s1, 496
      %v1316 = vld [vmem:[%s1315] sm:$0xf]
      %v1317 = vld [vmem:[%s1315 + $0x4] sm:$0xf]
      %v1318 = vld [vmem:[%s1315 + $0x8] sm:$0xf]
      %v1319 = vld [vmem:[%s1315 + $0xc] sm:$0xf]
      %v1324 = vunpack.c.l.b16 %v1316
      %v1325 = vunpack.c.l.b16 %v1317
      %v1326 = vunpack.c.l.b16 %v1318
      %v1327 = vunpack.c.l.b16 %v1319
      %v1328 = vpack.c.b16 %v1325, %v1324
      %v1329 = vpack.c.b16 %v1327, %v1326
      %v1333 = vsel %vm194, %v1314, 0
      %1335 = vmatpush.bf16.msra.mxu0 0
      %1336 = vmatpush.bf16.msra.mxu0 0
      %1337 = vmatpush.bf16.msra.mxu0 0
      %1338 = vmatpush.bf16.msra.mxu0 0
      %1339 = vmatpush.bf16.msra.mxu0 0
      %1340 = vmatpush.bf16.msra.mxu0 0
      %1341 = vmatpush.bf16.msra.mxu0 %v1329
      %1342 = vmatpush.bf16.msra.mxu0 %v1328
      %1343 = vmatmul.bf16.gmra.mxu0 %v1333
      %v1344 = vpop.f32.mrf.mxu0
      %v1345 = vadd.f32 0.0, %v1344
      %v1346 = vpop.f32.mrf.mxu0
      %1347 = vdwg.mxu0
      %v1348 = vadd.f32 %v1311, %v1345
      %v1349 = vld [vmem:[%s2] sm:$0x1]
      %v1351 = vperm.slane %v1349, 0
      %v1353 = vadd.f32 %v1348, %v1351
      %v1354 = vpack.c.bf16 %v1353, %v1353
      %1355 = vst [vmem:[%s166] sm:$0x1] %v1354
      %p1356 = scmp.lt.s32.totalorder %s14, 3
      %s1357 = scalar_select %p1356, %s14, 3
      %s1358 = scalar_lea.vmem %s3, %s1357
      // Predicated region
      $region33: #{model_forward.2} parent=31 // pred_check
        %p1359 = pneg %p100
      $region34: #{model_forward.2} parent=31 // pred_check_branch
        %1361 = sbr.rel (%p1359) target = $region36
      $region35: #{model_forward.2} parent=31 // pred_region
        _
      $region36: #{model_forward.2} parent=31 // pred_fallthru
        _
    $region32: #{model_forward.2} parent=5 // pred_fallthru
      _
    %p1362 = scmp.le.s32.totalorder 2, %s9
    // Predicated region
    $region37: #{model_forward.2} parent=5 // pred_check
      %p1363 = pneg %p1362
    $region38: #{model_forward.2} parent=5 // pred_check_branch
      %1365 = sbr.rel (%p1363) target = $region40
    $region39: #{model_forward.2} parent=5 // pred_region
      %s1366 = ssub.s32 %s9, 2
      // Predicated region
      $region41: #{model_forward.2} parent=39 // pred_check
        %p1367 = pneg %p106
      $region42: #{model_forward.2} parent=39 // pred_check_branch
        %1369 = sbr.rel (%p1367) target = $region44
      $region43: #{model_forward.2} parent=39 // pred_region
        %p1370 = scmp.lt.s32.totalorder %s15, 3
        %s1371 = scalar_select %p1370, %s15, 3
        %s1372 = scalar_lea.vmem %s3, %s1371
      $region44: #{model_forward.2} parent=39 // pred_fallthru
        _
    $region40: #{model_forward.2} parent=5 // pred_fallthru
      _
  $region6: #{model_forward.2} parent=0 // loop_footer
    %s13 = sadd.s32 1, %s9
  $region7: #{model_forward.2} parent=0 // loop_footer_branch
    %8 = sbr.rel target = $region3
  $region8: #{model_forward.2} parent=0 // loop_exit
    _

</llo_original>
